<compile_context>
chip_gen: v6e
topology: v6e:2x2x1
jax: 0.10.0
libtpu: 0.0.40
codegen_flags: <defaults>
</compile_context>

<pallas_src>
import jax
import jax.numpy as jnp
from jax.experimental import pallas as pl
from jax.experimental.pallas import tpu as pltpu


def _round_up(x, m):
    return (x + m - 1) // m * m


# ----------------------------------------------------------------------------
# Kernel 1: per-phase transposed-conv matmul (bf16 MXU, f32 accumulate) with
# fused per-tile BatchNorm partial statistics in the epilogue.
# grid = (phase, M tiles, K tiles); K is the reduction axis.
# ----------------------------------------------------------------------------
def _upconv_matmul_kernel(a_ref, w_ref, y_ref, sum_ref, ssq_ref):
    k = pl.program_id(2)

    @pl.when(k == 0)
    def _init():
        y_ref[...] = jnp.zeros_like(y_ref)

    y_ref[...] += jnp.dot(a_ref[...], w_ref[...],
                          preferred_element_type=jnp.float32)

    @pl.when(k == pl.num_programs(2) - 1)
    def _finalize():
        y = y_ref[...]                                    # (tm, Co_pad) f32
        s = jnp.sum(y, axis=0, keepdims=True)             # (1, Co_pad)
        sq = jnp.sum(y * y, axis=0, keepdims=True)
        sum_ref[...] = jnp.broadcast_to(s, sum_ref.shape)
        ssq_ref[...] = jnp.broadcast_to(sq, ssq_ref.shape)


# ----------------------------------------------------------------------------
# Kernel 2: tiled BatchNorm normalize, in place over y (input_output_aliases).
# sb row 0 = 1/sqrt(var+eps), row 1 = -mean/sqrt(var+eps).
# ----------------------------------------------------------------------------
def _bn_normalize_kernel(y_ref, sb_ref, o_ref):
    scale = sb_ref[0:1, :]
    bias = sb_ref[1:2, :]
    o_ref[...] = y_ref[...] * scale + bias


def upconv2d_block(x_nchw, weight_t, skip_input=None, *, stride=2, padding=1,
                   tile_m=256, vmem_limit_bytes=None):
    """ReLU -> ConvTranspose2d(k=4, s=2, p=1, bias=False) -> BatchNorm2d -> cat."""
    N, C, H, W = x_nchw.shape
    Ci, Co, KH, KW = weight_t.shape
    assert Ci == C
    assert (KH, KW) == (4, 4) and stride == 2 and padding == 1, \
        "phase decomposition below is specialised to k=4, s=2, p=1"
    OH, OW = 2 * H, 2 * W

    # ---- glue: ReLU once on x, pad by 1, build per-phase 2x2 windows ----
    x = jnp.maximum(x_nchw.astype(jnp.float32), 0.0)            # ReLU in wrapper
    x = jnp.transpose(x, (0, 2, 3, 1))                          # NHWC
    xp = jnp.pad(x, ((0, 0), (1, 1), (1, 1), (0, 0)))

    M = N * H * W
    Kc = 4 * C                        # 2x2 taps * Cin per phase
    Co_pad = _round_up(Co, 128)       # lane-dense output stores
    tm = min(tile_m, _round_up(M, 8))
    M_pad = _round_up(M, tm)
    Mt = M_pad // tm
    if Kc <= 1024:                    # small Cin: K resident in one step
        K_pad = tk = _round_up(Kc, 8)
    else:                             # large Cin: bound VMEM via K tiling
        tk = 512
        K_pad = _round_up(Kc, tk)
    Kt = K_pad // tk

    patch_list, w_list = [], []
    for ph in range(2):
        for pw in range(2):
            # Output pixel (2m+ph, 2w+pw) only sees the 2x2 padded-input window
            # xp[m+ph : m+ph+2, w+pw : w+pw+2] with taps kh = 3-ph-2*dh,
            # kw = 3-pw-2*dw of the ConvTranspose2d weight.
            wins = []
            for dh in range(2):
                for dw in range(2):
                    wins.append(xp[:, ph + dh:ph + dh + H, pw + dw:pw + dw + W, :])
            a_p = jnp.stack(wins, axis=3).reshape(M, Kc)        # (M, 4*C)
            w_p = jnp.take(weight_t, jnp.array([3 - ph, 1 - ph]), axis=2)
            w_p = jnp.take(w_p, jnp.array([3 - pw, 1 - pw]), axis=3)
            w_p = jnp.transpose(w_p, (2, 3, 0, 1)).reshape(Kc, Co)  # (dh,dw,ci) x co
            patch_list.append(a_p)
            w_list.append(w_p)

    patches = jnp.stack(patch_list, axis=0)                      # (4, M, Kc)
    patches = jnp.pad(patches, ((0, 0), (0, M_pad - M), (0, K_pad - Kc)))
    patches = patches.astype(jnp.bfloat16)                       # bf16 MXU inputs
    w_all = jnp.stack(w_list, axis=0)                            # (4, Kc, Co)
    w_all = jnp.pad(w_all, ((0, 0), (0, K_pad - Kc), (0, Co_pad - Co)))
    w_all = w_all.astype(jnp.bfloat16)

    conv_params = dict(dimension_semantics=("parallel", "parallel", "arbitrary"))
    norm_params = dict(dimension_semantics=("parallel", "parallel"))
    if vmem_limit_bytes is not None:   # raise per-generation when using big tiles
        conv_params["vmem_limit_bytes"] = vmem_limit_bytes
        norm_params["vmem_limit_bytes"] = vmem_limit_bytes

    # ---- Pallas kernel 1: phase matmuls + fused BN partial stats ----
    y_conv, tile_sum, tile_ssq = pl.pallas_call(
        _upconv_matmul_kernel,
        out_shape=(
            jax.ShapeDtypeStruct((4, M_pad, Co_pad), jnp.float32),
            jax.ShapeDtypeStruct((4, Mt, 8, Co_pad), jnp.float32),
            jax.ShapeDtypeStruct((4, Mt, 8, Co_pad), jnp.float32),
        ),
        grid=(4, Mt, Kt),
        in_specs=[
            pl.BlockSpec((None, tm, tk), lambda p, i, k: (p, i, k)),
            pl.BlockSpec((None, tk, Co_pad), lambda p, i, k: (p, k, 0)),
        ],
        out_specs=[
            pl.BlockSpec((None, tm, Co_pad), lambda p, i, k: (p, i, 0)),
            pl.BlockSpec((None, None, 8, Co_pad), lambda p, i, k: (p, i, 0, 0)),
            pl.BlockSpec((None, None, 8, Co_pad), lambda p, i, k: (p, i, 0, 0)),
        ],
        compiler_params=pltpu.CompilerParams(**conv_params),
    )(patches, w_all)

    # ---- tiny cross-tile stat combine (O(phases*tiles*C)) in plain JAX ----
    count = jnp.float32(4 * M)                       # == N*OH*OW (pad rows are 0)
    ch_sum = jnp.sum(tile_sum[:, :, 0, :], axis=(0, 1))
    ch_ssq = jnp.sum(tile_ssq[:, :, 0, :], axis=(0, 1))
    mean = ch_sum / count
    var = jnp.maximum(ch_ssq / count - mean * mean, 0.0)
    rstd = jax.lax.rsqrt(var + 1e-5)
    sb = jnp.zeros((8, Co_pad), jnp.float32)
    sb = sb.at[0].set(rstd)
    sb = sb.at[1].set(-mean * rstd)

    # ---- Pallas kernel 2: tiled normalize, in place over y ----
    y_norm = pl.pallas_call(
        _bn_normalize_kernel,
        out_shape=jax.ShapeDtypeStruct((4, M_pad, Co_pad), jnp.float32),
        grid=(4, Mt),
        in_specs=[
            pl.BlockSpec((None, tm, Co_pad), lambda p, i: (p, i, 0)),
            pl.BlockSpec((8, Co_pad), lambda p, i: (0, 0)),
        ],
        out_specs=pl.BlockSpec((None, tm, Co_pad), lambda p, i: (p, i, 0)),
        input_output_aliases={0: 0},
        compiler_params=pltpu.CompilerParams(**norm_params),
    )(y_conv, sb)

    # ---- glue: drop padding, pixel-shuffle phases, back to NCHW, concat ----
    y = y_norm[:, :M, :Co].reshape(2, 2, N, H, W, Co)            # (ph, pw, n, h, w, c)
    y = jnp.transpose(y, (2, 3, 0, 4, 1, 5)).reshape(N, OH, OW, Co)
    out = jnp.transpose(y, (0, 3, 1, 2))
    if skip_input is not None:
        out = jnp.concatenate([out, skip_input.astype(out.dtype)], axis=1)
    return out


def _reference(x_nchw, weight_t, skip_input=None, *, stride=2, padding=1,
               eps=1e-5):
    """Independent plain-JAX reference (lhs-dilated conv == ConvTranspose2d)."""
    KH, KW = weight_t.shape[2], weight_t.shape[3]
    xr = jnp.maximum(x_nchw.astype(jnp.float32), 0.0)
    w_conv = jnp.transpose(weight_t[:, :, ::-1, ::-1], (1, 0, 2, 3))  # OIHW
    y = jax.lax.conv_general_dilated(
        xr, w_conv.astype(jnp.float32),
        window_strides=(1, 1),
        padding=[(KH - 1 - padding,) * 2, (KW - 1 - padding,) * 2],
        lhs_dilation=(stride, stride),
        dimension_numbers=("NCHW", "OIHW", "NCHW"),
        precision=jax.lax.Precision.HIGHEST)
    mean = y.mean(axis=(0, 2, 3), keepdims=True)
    var = ((y - mean) ** 2).mean(axis=(0, 2, 3), keepdims=True)
    y = (y - mean) / jnp.sqrt(var + eps)
    if skip_input is not None:
        y = jnp.concatenate([y, skip_input.astype(y.dtype)], axis=1)
    return y


# TODO(synk): up_mode='upsample' (bilinear Upsample + 3x3 Conv2d) and the
# use_dropout branch are not exercised by the default config and are not implemented.

if __name__ == "__main__":
    key = jax.random.PRNGKey(0)
    k1, k2, k3 = jax.random.split(key, 3)

    N, Cin, Cout, H, W = 2, 4, 8, 16, 16
    x = jax.random.normal(k1, (N, Cin, H, W), jnp.float32)
    # ConvTranspose2d weight shape: (input_nc, output_nc, KH, KW)
    weight_t = 0.1 * jax.random.normal(k2, (Cin, Cout, 4, 4), jnp.float32)
    skip = jax.random.normal(k3, (N, Cout, 2 * H, 2 * W), jnp.float32)

    fwd = jax.jit(upconv2d_block,
                  static_argnames=("stride", "padding", "tile_m",
                                   "vmem_limit_bytes"))
    out = jax.block_until_ready(fwd(x, weight_t, skip))
    assert out.shape == (N, 2 * Cout, 2 * H, 2 * W), out.shape

    ref = _reference(x, weight_t, skip)
    if not jnp.allclose(out, ref, rtol=2e-2, atol=2e-2):
        max_err = float(jnp.max(jnp.abs(out - ref)))
        raise AssertionError(f"Pallas output mismatch vs reference, max err {max_err}")

    print("KERNEL_OK")
</pallas_src>

<mosaic_0001>
module attributes {stable_mosaic.version = 11 : i64} {
  func.func @_upconv_matmul_kernel(%arg0: i32, %arg1: i32, %arg2: i32, %arg3: memref<1x256x16xbf16, #tpu.memory_space<vmem>>, %arg4: memref<1x16x128xbf16, #tpu.memory_space<vmem>>, %arg5: memref<1x256x128xf32, #tpu.memory_space<vmem>>, %arg6: memref<1x1x8x128xf32, #tpu.memory_space<vmem>>, %arg7: memref<1x1x8x128xf32, #tpu.memory_space<vmem>>) attributes {dimension_semantics = [#tpu.dimension_semantics<parallel>, #tpu.dimension_semantics<parallel>, #tpu.dimension_semantics<arbitrary>], iteration_bounds = array<i64: 4, 2, 1>, scalar_prefetch = 0 : i64, scratch_operands = 0 : i64, tpu.core_type = #tpu.core_type<tc>, window_params = [{transform_indices = @transform_0, window_bounds = array<i64: 1, 256, 16>}, {transform_indices = @transform_1, window_bounds = array<i64: 1, 16, 128>}, {transform_indices = @transform_2, window_bounds = array<i64: 1, 256, 128>}, {transform_indices = @transform_3, window_bounds = array<i64: 1, 1, 8, 128>}, {transform_indices = @transform_4, window_bounds = array<i64: 1, 1, 8, 128>}]} {
    %c0_i32 = arith.constant 0 : i32
    %0 = arith.cmpi eq, %arg2, %c0_i32 : i32
    %1 = arith.extui %0 : i1 to i32
    %c0_i32_0 = arith.constant 0 : i32
    %2 = arith.cmpi ne, %1, %c0_i32_0 : i32
    scf.if %2 {
      %cst_14 = arith.constant 0.000000e+00 : f32
      %17 = vector.broadcast %cst_14 : f32 to vector<256x128xf32>
      %c0_15 = arith.constant 0 : index
      %c0_16 = arith.constant 0 : index
      %c0_17 = arith.constant 0 : index
      %18 = vector.load %arg5[%c0_15, %c0_16, %c0_17] : memref<1x256x128xf32, #tpu.memory_space<vmem>>, vector<1x256x128xf32>
      %19 = vector.shape_cast %18 : vector<1x256x128xf32> to vector<256x128xf32>
      %20 = vector.shape_cast %17 : vector<256x128xf32> to vector<1x256x128xf32>
      tpu.vector_store %arg5[%c0_15, %c0_16, %c0_17], %20 {strides = array<i32>} : memref<1x256x128xf32, #tpu.memory_space<vmem>>, vector<1x256x128xf32>,
    } else {
    }
    %c0 = arith.constant 0 : index
    %c0_1 = arith.constant 0 : index
    %c0_2 = arith.constant 0 : index
    %3 = vector.load %arg5[%c0, %c0_1, %c0_2] : memref<1x256x128xf32, #tpu.memory_space<vmem>>, vector<1x256x128xf32>
    %4 = vector.shape_cast %3 : vector<1x256x128xf32> to vector<256x128xf32>
    %c0_3 = arith.constant 0 : index
    %c0_4 = arith.constant 0 : index
    %c0_5 = arith.constant 0 : index
    %5 = vector.load %arg3[%c0_3, %c0_4, %c0_5] : memref<1x256x16xbf16, #tpu.memory_space<vmem>>, vector<1x256x16xbf16>
    %6 = vector.shape_cast %5 : vector<1x256x16xbf16> to vector<256x16xbf16>
    %c0_6 = arith.constant 0 : index
    %c0_7 = arith.constant 0 : index
    %c0_8 = arith.constant 0 : index
    %7 = vector.load %arg4[%c0_6, %c0_7, %c0_8] : memref<1x16x128xbf16, #tpu.memory_space<vmem>>, vector<1x16x128xbf16>
    %8 = vector.shape_cast %7 : vector<1x16x128xbf16> to vector<16x128xbf16>
    %cst = arith.constant dense<0.000000e+00> : vector<256x128xf32>
    %9 = tpu.matmul %6, %8, %cst {dimension_numbers = #tpu.dot_dimension_numbers<[1], [0], [0], [1], [0, 0, 1, 1], [], []>} : vector<256x16xbf16>, vector<16x128xbf16>, vector<256x128xf32> -> vector<256x128xf32>
    %10 = arith.addf %4, %9 : vector<256x128xf32>
    %c0_9 = arith.constant 0 : index
    %c0_10 = arith.constant 0 : index
    %c0_11 = arith.constant 0 : index
    %11 = vector.load %arg5[%c0_9, %c0_10, %c0_11] : memref<1x256x128xf32, #tpu.memory_space<vmem>>, vector<1x256x128xf32>
    %12 = vector.shape_cast %11 : vector<1x256x128xf32> to vector<256x128xf32>
    %13 = vector.shape_cast %10 : vector<256x128xf32> to vector<1x256x128xf32>
    tpu.vector_store %arg5[%c0_9, %c0_10, %c0_11], %13 {strides = array<i32>} : memref<1x256x128xf32, #tpu.memory_space<vmem>>, vector<1x256x128xf32>,
    %c0_i32_12 = arith.constant 0 : i32
    %14 = arith.cmpi eq, %arg2, %c0_i32_12 : i32
    %15 = arith.extui %14 : i1 to i32
    %c0_i32_13 = arith.constant 0 : i32
    %16 = arith.cmpi ne, %15, %c0_i32_13 : i32
    scf.if %16 {
      %c0_14 = arith.constant 0 : index
      %c0_15 = arith.constant 0 : index
      %c0_16 = arith.constant 0 : index
      %17 = vector.load %arg5[%c0_14, %c0_15, %c0_16] : memref<1x256x128xf32, #tpu.memory_space<vmem>>, vector<1x256x128xf32>
      %18 = vector.shape_cast %17 : vector<1x256x128xf32> to vector<256x128xf32>
      %cst_17 = arith.constant dense<0.000000e+00> : vector<128xf32>
      %19 = vector.multi_reduction <add>, %18, %cst_17 [0] : vector<256x128xf32> to vector<128xf32>
      %20 = vector.shape_cast %19 : vector<128xf32> to vector<1x128xf32>
      %21 = arith.mulf %18, %18 : vector<256x128xf32>
      %cst_18 = arith.constant dense<0.000000e+00> : vector<128xf32>
      %22 = vector.multi_reduction <add>, %21, %cst_18 [0] : vector<256x128xf32> to vector<128xf32>
      %23 = vector.shape_cast %22 : vector<128xf32> to vector<1x128xf32>
      %24 = vector.shape_cast %20 : vector<1x128xf32> to vector<1x128xf32>
      %25 = vector.broadcast %24 : vector<1x128xf32> to vector<8x128xf32>
      %c0_19 = arith.constant 0 : index
      %c0_20 = arith.constant 0 : index
      %c0_21 = arith.constant 0 : index
      %c0_22 = arith.constant 0 : index
      %26 = vector.load %arg6[%c0_19, %c0_20, %c0_21, %c0_22] : memref<1x1x8x128xf32, #tpu.memory_space<vmem>>, vector<1x1x8x128xf32>
      %27 = vector.shape_cast %26 : vector<1x1x8x128xf32> to vector<8x128xf32>
      %28 = vector.shape_cast %25 : vector<8x128xf32> to vector<1x1x8x128xf32>
      tpu.vector_store %arg6[%c0_19, %c0_20, %c0_21, %c0_22], %28 {strides = array<i32>} : memref<1x1x8x128xf32, #tpu.memory_space<vmem>>, vector<1x1x8x128xf32>,
      %29 = vector.shape_cast %23 : vector<1x128xf32> to vector<1x128xf32>
      %30 = vector.broadcast %29 : vector<1x128xf32> to vector<8x128xf32>
      %c0_23 = arith.constant 0 : index
      %c0_24 = arith.constant 0 : index
      %c0_25 = arith.constant 0 : index
      %c0_26 = arith.constant 0 : index
      %31 = vector.load %arg7[%c0_23, %c0_24, %c0_25, %c0_26] : memref<1x1x8x128xf32, #tpu.memory_space<vmem>>, vector<1x1x8x128xf32>
      %32 = vector.shape_cast %31 : vector<1x1x8x128xf32> to vector<8x128xf32>
      %33 = vector.shape_cast %30 : vector<8x128xf32> to vector<1x1x8x128xf32>
      tpu.vector_store %arg7[%c0_23, %c0_24, %c0_25, %c0_26], %33 {strides = array<i32>} : memref<1x1x8x128xf32, #tpu.memory_space<vmem>>, vector<1x1x8x128xf32>,
    } else {
    }
    return
  }
  func.func @transform_0(%arg0: i32, %arg1: i32, %arg2: i32) -> (i32, i32, i32) {
    %c0_i32 = arith.constant 0 : i32
    return %arg0, %arg1, %arg2 : i32, i32, i32
  }
  func.func @transform_1(%arg0: i32, %arg1: i32, %arg2: i32) -> (i32, i32, i32) {
    %c0_i32 = arith.constant 0 : i32
    %c0_i32_0 = arith.constant 0 : i32
    return %arg0, %arg2, %c0_i32 : i32, i32, i32
  }
  func.func @transform_2(%arg0: i32, %arg1: i32, %arg2: i32) -> (i32, i32, i32) {
    %c0_i32 = arith.constant 0 : i32
    %c0_i32_0 = arith.constant 0 : i32
    return %arg0, %arg1, %c0_i32 : i32, i32, i32
  }
  func.func @transform_3(%arg0: i32, %arg1: i32, %arg2: i32) -> (i32, i32, i32, i32) {
    %c0_i32 = arith.constant 0 : i32
    %c0_i32_0 = arith.constant 0 : i32
    %c0_i32_1 = arith.constant 0 : i32
    return %arg0, %arg1, %c0_i32, %c0_i32_0 : i32, i32, i32, i32
  }
  func.func @transform_4(%arg0: i32, %arg1: i32, %arg2: i32) -> (i32, i32, i32, i32) {
    %c0_i32 = arith.constant 0 : i32
    %c0_i32_0 = arith.constant 0 : i32
    %c0_i32_1 = arith.constant 0 : i32
    return %arg0, %arg1, %c0_i32, %c0_i32_0 : i32, i32, i32, i32
  }
}

module attributes {stable_mosaic.version = 11 : i64} {
  func.func @_bn_normalize_kernel(%arg0: i32, %arg1: i32, %arg2: memref<1x256x128xf32, #tpu.memory_space<vmem>>, %arg3: memref<8x128xf32, #tpu.memory_space<vmem>>, %arg4: memref<1x256x128xf32, #tpu.memory_space<vmem>>) attributes {dimension_semantics = [#tpu.dimension_semantics<parallel>, #tpu.dimension_semantics<parallel>], iteration_bounds = array<i64: 4, 2>, scalar_prefetch = 0 : i64, scratch_operands = 0 : i64, tpu.core_type = #tpu.core_type<tc>, window_params = [{transform_indices = @transform_0, window_bounds = array<i64: 1, 256, 128>}, {pipeline_mode = #tpu.pipeline_mode<synchronous>, transform_indices = @transform_1, window_bounds = array<i64: 8, 128>}, {transform_indices = @transform_2, window_bounds = array<i64: 1, 256, 128>}]} {
    %c0 = arith.constant 0 : index
    %c0_0 = arith.constant 0 : index
    %0 = vector.load %arg3[%c0, %c0_0] : memref<8x128xf32, #tpu.memory_space<vmem>>, vector<1x128xf32>
    %c1 = arith.constant 1 : index
    %c0_1 = arith.constant 0 : index
    %1 = vector.load %arg3[%c1, %c0_1] : memref<8x128xf32, #tpu.memory_space<vmem>>, vector<1x128xf32>
    %c0_2 = arith.constant 0 : index
    %c0_3 = arith.constant 0 : index
    %c0_4 = arith.constant 0 : index
    %2 = vector.load %arg2[%c0_2, %c0_3, %c0_4] : memref<1x256x128xf32, #tpu.memory_space<vmem>>, vector<1x256x128xf32>
    %3 = vector.shape_cast %2 : vector<1x256x128xf32> to vector<256x128xf32>
    %4 = vector.broadcast %0 : vector<1x128xf32> to vector<256x128xf32>
    %5 = arith.mulf %3, %4 : vector<256x128xf32>
    %6 = vector.broadcast %1 : vector<1x128xf32> to vector<256x128xf32>
    %7 = arith.addf %5, %6 : vector<256x128xf32>
    %c0_5 = arith.constant 0 : index
    %c0_6 = arith.constant 0 : index
    %c0_7 = arith.constant 0 : index
    %8 = vector.load %arg4[%c0_5, %c0_6, %c0_7] : memref<1x256x128xf32, #tpu.memory_space<vmem>>, vector<1x256x128xf32>
    %9 = vector.shape_cast %8 : vector<1x256x128xf32> to vector<256x128xf32>
    %10 = vector.shape_cast %7 : vector<256x128xf32> to vector<1x256x128xf32>
    tpu.vector_store %arg4[%c0_5, %c0_6, %c0_7], %10 {strides = array<i32>} : memref<1x256x128xf32, #tpu.memory_space<vmem>>, vector<1x256x128xf32>,
    return
  }
  func.func @transform_0(%arg0: i32, %arg1: i32) -> (i32, i32, i32) {
    %c0_i32 = arith.constant 0 : i32
    %c0_i32_0 = arith.constant 0 : i32
    return %arg0, %arg1, %c0_i32 : i32, i32, i32
  }
  func.func @transform_1(%arg0: i32, %arg1: i32) -> (i32, i32) {
    %c0_i32 = arith.constant 0 : i32
    %c0_i32_0 = arith.constant 0 : i32
    %c0_i32_1 = arith.constant 0 : i32
    return %c0_i32, %c0_i32_0 : i32, i32
  }
  func.func @transform_2(%arg0: i32, %arg1: i32) -> (i32, i32, i32) {
    %c0_i32 = arith.constant 0 : i32
    %c0_i32_0 = arith.constant 0 : i32
    return %arg0, %arg1, %c0_i32 : i32, i32, i32
  }
}

</mosaic_0001>

<llo_original>
// kernel: upconv2d_block.3
$region0: #{upconv2d_block.3}
  #allocation0 [shape = 'u32[]', space=smem, size = 0x4, offset = 0x4, fixed_abs, tag = 'smem constant byte address 0x4 - core index']
  #allocation1 [shape = 'u32[144,128]{1,0:T(1,128)}', space=vmem, size = 0x12000, scoped, tag = 'internal scratch']
  %s0 = inlined_call_operand.vmem [shape: f32[4,512,128], index: 0, kind: input, shape index: {}, may-alias: {0,2}]
  %s1 = inlined_call_operand.vmem [shape: f32[8,128], index: 1, kind: input, shape index: {}]
  %s2 = inlined_call_operand.vmem [shape: f32[4,512,128], index: 2, kind: output, shape index: {}, may-alias: {0,2}]
  %s3 = sld [smem:[#allocation0]]
  $region41: #{upconv2d_block.3} parent=0
    _
  %s5 = ssub.s32 1, %s3
  %s6 = scalar_select 0, %s5, %s3
  loop: start=0, step=1, limit=10
  $region2: #{upconv2d_block.3} parent=0 // loop_pre_header
    _
  $region3: #{upconv2d_block.3} parent=0 // loop_header
    %s8 = sphi 0, %s12
    %p9 = scmp.ge.s32.totalorder %s8, 10
    %s15 = sphi 0, %s27
    %s16 = sphi 0, %s23
    %s17 = sphi 0, %s15
    %s18 = sphi 0, %s16
    %s19 = sphi 0, %s17
    %s20 = sphi 0, %s18
    %s32 = sphi 0, %s34
    %s35 = sphi 0, %s32
    %s36 = sphi 0, %s35
    %s52 = sphi 0, %s36
    %s56 = sphi 0, %s56
    %s58 = sphi 0, %s56
    %s59 = sphi 0, %s58
    %s73 = sphi 0, %s59
    %s81 = sphi 0, %s83
    %s84 = sphi 0, %s81
    %s85 = sphi 0, %s84
    %s101 = sphi 0, %s85
  $region4: #{upconv2d_block.3} parent=0 // loop_header_branch
    %11 = sbr.rel (%p9) target = $region8
  $region5: #{upconv2d_block.3} parent=0 // loop_body
    %s13 = ssub.s32 %s8, 1
    %s14 = ssub.s32 %s8, 2
    %s21 = sadd.s32 1, %s16
    %p22 = scmp.ge.s32.totalorder %s21, 2
    %s23 = scalar_select %p22, 0, %s21
    %s24 = sadd.s32 1, %s15
    %s25 = scalar_select %p22, %s24, %s15
    %p26 = scmp.ge.s32.totalorder %s25, 4
    %s27 = scalar_select %p26, 0, %s25
    %s28 = ssub.s32 %s15, %s27
    %s29 = ssub.s32 %s16, %s23
    %s30 = sor.u32 %s28, %s29
    %p31 = scmp.eq.s32.totalorder %s30, 0
    %s33 = sadd.s32 %s32, 1
    %s34 = scalar_select %p31, %s32, %s33
    %p37 = pneg %p31
    %p38 = scmp.eq.s32.totalorder %s8, 7
    %p39 = por %p37, %p38
    %p40 = scmp.ne.s32.totalorder %s32, %s35
    %p41 = scmp.eq.s32.totalorder %s8, 0
    %p42 = por %p40, %p41
    %p43 = scmp.ne.s32.totalorder %s32, %s35
    %p44 = scmp.eq.s32.totalorder %s13, 7
    %p45 = por %p43, %p44
    %p46 = scmp.ne.s32.totalorder %s35, %s36
    %p47 = scmp.eq.s32.totalorder %s13, 0
    %p48 = por %p46, %p47
    %p49 = scmp.ne.s32.totalorder %s35, %s36
    %p50 = scmp.eq.s32.totalorder %s14, 7
    %p51 = por %p49, %p50
    %p53 = scmp.ne.s32.totalorder %s36, %s52
    %p54 = scmp.eq.s32.totalorder %s14, 0
    %p55 = por %p53, %p54
    %s57 = sadd.s32 %s56, 1
    %p60 = scmp.eq.s32.totalorder %s8, 7
    %p61 = scmp.ne.s32.totalorder %s56, %s58
    %p62 = scmp.eq.s32.totalorder %s8, 0
    %p63 = por %p61, %p62
    %p64 = scmp.ne.s32.totalorder %s56, %s58
    %p65 = scmp.eq.s32.totalorder %s13, 7
    %p66 = por %p64, %p65
    %p67 = scmp.ne.s32.totalorder %s58, %s59
    %p68 = scmp.eq.s32.totalorder %s13, 0
    %p69 = por %p67, %p68
    %p70 = scmp.ne.s32.totalorder %s58, %s59
    %p71 = scmp.eq.s32.totalorder %s14, 7
    %p72 = por %p70, %p71
    %p74 = scmp.ne.s32.totalorder %s59, %s73
    %p75 = scmp.eq.s32.totalorder %s14, 0
    %p76 = por %p74, %p75
    %s77 = ssub.s32 %s15, %s27
    %s78 = ssub.s32 %s16, %s23
    %s79 = sor.u32 %s77, %s78
    %p80 = scmp.eq.s32.totalorder %s79, 0
    %s82 = sadd.s32 %s81, 1
    %s83 = scalar_select %p80, %s81, %s82
    %p86 = pneg %p80
    %p87 = scmp.eq.s32.totalorder %s8, 7
    %p88 = por %p86, %p87
    %p89 = scmp.ne.s32.totalorder %s81, %s84
    %p90 = scmp.eq.s32.totalorder %s8, 0
    %p91 = por %p89, %p90
    %p92 = scmp.ne.s32.totalorder %s81, %s84
    %p93 = scmp.eq.s32.totalorder %s13, 7
    %p94 = por %p92, %p93
    %p95 = scmp.ne.s32.totalorder %s84, %s85
    %p96 = scmp.eq.s32.totalorder %s13, 0
    %p97 = por %p95, %p96
    %p98 = scmp.ne.s32.totalorder %s84, %s85
    %p99 = scmp.eq.s32.totalorder %s14, 7
    %p100 = por %p98, %p99
    %p102 = scmp.ne.s32.totalorder %s85, %s101
    %p103 = scmp.eq.s32.totalorder %s14, 0
    %p104 = por %p102, %p103
    %p105 = scmp.le.s32.totalorder 1, %s8
    %p106 = scmp.lt.s32.totalorder %s8, 9
    %p107 = pnand %p105, %p106
    %p108 = pneg %p107
    // Predicated region
    $region9: #{upconv2d_block.3} parent=5 // pred_check
      _
    $region10: #{upconv2d_block.3} parent=5 // pred_check_branch
      %110 = sbr.rel (%p107) target = $region12
    $region11: #{upconv2d_block.3} parent=5 // pred_region
      %s111 = ssub.s32 %s8, 1
      // Predicated region
      $region13: #{upconv2d_block.3} parent=11 // pred_check
        %p112 = pneg %p69
      $region14: #{upconv2d_block.3} parent=11 // pred_check_branch
        %114 = sbr.rel (%p112) target = $region16
      $region15: #{upconv2d_block.3} parent=11 // pred_region
        _
      $region16: #{upconv2d_block.3} parent=11 // pred_fallthru
        _
    $region12: #{upconv2d_block.3} parent=5 // pred_fallthru
      _
    %p115 = scmp.lt.s32.totalorder %s8, 8
    // Predicated region
    $region17: #{upconv2d_block.3} parent=5 // pred_check
      %p116 = pneg %p115
    $region18: #{upconv2d_block.3} parent=5 // pred_check_branch
      %118 = sbr.rel (%p116) target = $region20
    $region19: #{upconv2d_block.3} parent=5 // pred_region
      // Predicated region
      $region21: #{upconv2d_block.3} parent=19 // pred_check
        %p119 = pneg %p42
      $region22: #{upconv2d_block.3} parent=19 // pred_check_branch
        %121 = sbr.rel (%p119) target = $region24
      $region23: #{upconv2d_block.3} parent=19 // pred_region
        %s122 = smul.u32 32, %s16
        %p123 = scmp.lt.s32.totalorder %s15, 3
        %s124 = scalar_select %p123, %s15, 3
        %p125 = scmp.lt.s32.totalorder %s122, 63
        %s126 = scalar_select %p125, %s122, 63
        %s127 = smul.addr %s124, 64
        %s128 = sadd.s32 %s126, %s127
        %s129 = smul.addr %s128, 8
        %s130 = scalar_lea.vmem %s0, %s129
        %s131 = smul.u32 32, %s16
      $region24: #{upconv2d_block.3} parent=19 // pred_fallthru
        _
    $region20: #{upconv2d_block.3} parent=5 // pred_fallthru
      _
    %p132 = scmp.le.s32.totalorder 1, %s8
    %p133 = scmp.lt.s32.totalorder %s8, 9
    %p134 = pnand %p132, %p133
    %p135 = pneg %p134
    // Predicated region
    $region25: #{upconv2d_block.3} parent=5 // pred_check
      _
    $region26: #{upconv2d_block.3} parent=5 // pred_check_branch
      %137 = sbr.rel (%p134) target = $region28
    $region27: #{upconv2d_block.3} parent=5 // pred_region
      %s138 = ssub.s32 %s8, 1
      %s139 = smul.u32 32, %s18
      %p140 = scmp.lt.s32.totalorder %s17, 3
      %s141 = scalar_select %p140, %s17, 3
      %p142 = scmp.lt.s32.totalorder %s139, 63
      %s143 = scalar_select %p142, %s139, 63
      %s144 = smul.addr %s141, 64
      %s145 = sadd.s32 %s143, %s144
      %s146 = smul.addr %s145, 8
      %s147 = scalar_lea.vmem %s0, %s146
      %p148 = pneg %p48
      %p149 = pneg %p45
      %p150 = pneg %p69
      %p151 = pneg %p66
      %p152 = pneg %p97
      %p153 = pneg %p94
      %s154 = smul.u32 32, %s18
      %p155 = scmp.lt.s32.totalorder %s17, 3
      %s156 = scalar_select %p155, %s17, 3
      %p157 = scmp.lt.s32.totalorder %s154, 63
      %s158 = scalar_select %p157, %s154, 63
      %s159 = smul.addr %s156, 64
      %s160 = sadd.s32 %s158, %s159
      %s161 = smul.addr %s160, 8
      %s162 = scalar_lea.vmem %s2, %s161
      %s163 = smul.u32 32, %s18
      %p164 = scmp.lt.s32.totalorder %s17, 3
      %s165 = scalar_select %p164, %s17, 3
      %p166 = scmp.lt.s32.totalorder %s163, 63
      %s167 = scalar_select %p166, %s163, 63
      %s168 = smul.addr %s165, 64
      %s169 = sadd.s32 %s167, %s168
      %s170 = smul.addr %s169, 8
      %s171 = scalar_lea.vmem %s0, %s170
      %s172 = smul.u32 32, %s18
      %s173 = smul.u32 32, %s18
      %p174 = scmp.lt.s32.totalorder %s17, 3
      %s175 = scalar_select %p174, %s17, 3
      %p176 = scmp.lt.s32.totalorder %s173, 63
      %s177 = scalar_select %p176, %s173, 63
      %s178 = smul.addr %s175, 64
      %s179 = sadd.s32 %s177, %s178
      %s180 = smul.addr %s179, 8
      %s181 = scalar_lea.vmem %s2, %s180
      %s182 = smul.u32 32, %s18
      %v183 = vld [vmem:[%s1] sm:$0x1]
      %v184 = vld [vmem:[%s1 + $0x1] sm:$0x1]
      %v185 = vld [vmem:[%s171] sm:$0xff]
      %v186 = vld [vmem:[%s171 + $0x8] sm:$0xff]
      %v187 = vld [vmem:[%s171 + $0x10] sm:$0xff]
      %v188 = vld [vmem:[%s171 + $0x18] sm:$0xff]
      %v189 = vld [vmem:[%s171 + $0x20] sm:$0xff]
      %v190 = vld [vmem:[%s171 + $0x28] sm:$0xff]
      %v191 = vld [vmem:[%s171 + $0x30] sm:$0xff]
      %v192 = vld [vmem:[%s171 + $0x38] sm:$0xff]
      %v193 = vld [vmem:[%s171 + $0x40] sm:$0xff]
      %v194 = vld [vmem:[%s171 + $0x48] sm:$0xff]
      %v195 = vld [vmem:[%s171 + $0x50] sm:$0xff]
      %v196 = vld [vmem:[%s171 + $0x58] sm:$0xff]
      %v197 = vld [vmem:[%s171 + $0x60] sm:$0xff]
      %v198 = vld [vmem:[%s171 + $0x68] sm:$0xff]
      %v199 = vld [vmem:[%s171 + $0x70] sm:$0xff]
      %v200 = vld [vmem:[%s171 + $0x78] sm:$0xff]
      %v201 = vld [vmem:[%s171 + $0x80] sm:$0xff]
      %v202 = vld [vmem:[%s171 + $0x88] sm:$0xff]
      %v203 = vld [vmem:[%s171 + $0x90] sm:$0xff]
      %v204 = vld [vmem:[%s171 + $0x98] sm:$0xff]
      %v205 = vld [vmem:[%s171 + $0xa0] sm:$0xff]
      %v206 = vld [vmem:[%s171 + $0xa8] sm:$0xff]
      %v207 = vld [vmem:[%s171 + $0xb0] sm:$0xff]
      %v208 = vld [vmem:[%s171 + $0xb8] sm:$0xff]
      %v209 = vld [vmem:[%s171 + $0xc0] sm:$0xff]
      %v210 = vld [vmem:[%s171 + $0xc8] sm:$0xff]
      %v211 = vld [vmem:[%s171 + $0xd0] sm:$0xff]
      %v212 = vld [vmem:[%s171 + $0xd8] sm:$0xff]
      %v213 = vld [vmem:[%s171 + $0xe0] sm:$0xff]
      %v214 = vld [vmem:[%s171 + $0xe8] sm:$0xff]
      %v215 = vld [vmem:[%s171 + $0xf0] sm:$0xff]
      %v216 = vld [vmem:[%s171 + $0xf8] sm:$0xff]
      %v217 = vlaneseq
      %v218 = vshrl.u32 %v217, 7
      %v219 = vsub.s32 0, %v218
      %v220 = vrot.slane %v183, %v219
      %v221 = vmul.f32 %v185, %v220
      %v222 = vmul.f32 %v186, %v220
      %v223 = vmul.f32 %v187, %v220
      %v224 = vmul.f32 %v188, %v220
      %v225 = vmul.f32 %v189, %v220
      %v226 = vmul.f32 %v190, %v220
      %v227 = vmul.f32 %v191, %v220
      %v228 = vmul.f32 %v192, %v220
      %v229 = vmul.f32 %v193, %v220
      %v230 = vmul.f32 %v194, %v220
      %v231 = vmul.f32 %v195, %v220
      %v232 = vmul.f32 %v196, %v220
      %v233 = vmul.f32 %v197, %v220
      %v234 = vmul.f32 %v198, %v220
      %v235 = vmul.f32 %v199, %v220
      %v236 = vmul.f32 %v200, %v220
      %v237 = vmul.f32 %v201, %v220
      %v238 = vmul.f32 %v202, %v220
      %v239 = vmul.f32 %v203, %v220
      %v240 = vmul.f32 %v204, %v220
      %v241 = vmul.f32 %v205, %v220
      %v242 = vmul.f32 %v206, %v220
      %v243 = vmul.f32 %v207, %v220
      %v244 = vmul.f32 %v208, %v220
      %v245 = vmul.f32 %v209, %v220
      %v246 = vmul.f32 %v210, %v220
      %v247 = vmul.f32 %v211, %v220
      %v248 = vmul.f32 %v212, %v220
      %v249 = vmul.f32 %v213, %v220
      %v250 = vmul.f32 %v214, %v220
      %v251 = vmul.f32 %v215, %v220
      %v252 = vmul.f32 %v216, %v220
      %v253 = vlaneseq
      %v254 = vshrl.u32 %v253, 7
      %v255 = vsub.s32 0, %v254
      %v256 = vrot.slane %v184, %v255
      %v257 = vadd.f32 %v221, %v256
      %v258 = vadd.f32 %v222, %v256
      %v259 = vadd.f32 %v223, %v256
      %v260 = vadd.f32 %v224, %v256
      %v261 = vadd.f32 %v225, %v256
      %v262 = vadd.f32 %v226, %v256
      %v263 = vadd.f32 %v227, %v256
      %v264 = vadd.f32 %v228, %v256
      %v265 = vadd.f32 %v229, %v256
      %v266 = vadd.f32 %v230, %v256
      %v267 = vadd.f32 %v231, %v256
      %v268 = vadd.f32 %v232, %v256
      %v269 = vadd.f32 %v233, %v256
      %v270 = vadd.f32 %v234, %v256
      %v271 = vadd.f32 %v235, %v256
      %v272 = vadd.f32 %v236, %v256
      %v273 = vadd.f32 %v237, %v256
      %v274 = vadd.f32 %v238, %v256
      %v275 = vadd.f32 %v239, %v256
      %v276 = vadd.f32 %v240, %v256
      %v277 = vadd.f32 %v241, %v256
      %v278 = vadd.f32 %v242, %v256
      %v279 = vadd.f32 %v243, %v256
      %v280 = vadd.f32 %v244, %v256
      %v281 = vadd.f32 %v245, %v256
      %v282 = vadd.f32 %v246, %v256
      %v283 = vadd.f32 %v247, %v256
      %v284 = vadd.f32 %v248, %v256
      %v285 = vadd.f32 %v249, %v256
      %v286 = vadd.f32 %v250, %v256
      %v287 = vadd.f32 %v251, %v256
      %v288 = vadd.f32 %v252, %v256
      %289 = vst [vmem:[%s181] sm:$0xff] %v257
      %290 = vst [vmem:[%s181 + $0x8] sm:$0xff] %v258
      %291 = vst [vmem:[%s181 + $0x10] sm:$0xff] %v259
      %292 = vst [vmem:[%s181 + $0x18] sm:$0xff] %v260
      %293 = vst [vmem:[%s181 + $0x20] sm:$0xff] %v261
      %294 = vst [vmem:[%s181 + $0x28] sm:$0xff] %v262
      %295 = vst [vmem:[%s181 + $0x30] sm:$0xff] %v263
      %296 = vst [vmem:[%s181 + $0x38] sm:$0xff] %v264
      %297 = vst [vmem:[%s181 + $0x40] sm:$0xff] %v265
      %298 = vst [vmem:[%s181 + $0x48] sm:$0xff] %v266
      %299 = vst [vmem:[%s181 + $0x50] sm:$0xff] %v267
      %300 = vst [vmem:[%s181 + $0x58] sm:$0xff] %v268
      %301 = vst [vmem:[%s181 + $0x60] sm:$0xff] %v269
      %302 = vst [vmem:[%s181 + $0x68] sm:$0xff] %v270
      %303 = vst [vmem:[%s181 + $0x70] sm:$0xff] %v271
      %304 = vst [vmem:[%s181 + $0x78] sm:$0xff] %v272
      %305 = vst [vmem:[%s181 + $0x80] sm:$0xff] %v273
      %306 = vst [vmem:[%s181 + $0x88] sm:$0xff] %v274
      %307 = vst [vmem:[%s181 + $0x90] sm:$0xff] %v275
      %308 = vst [vmem:[%s181 + $0x98] sm:$0xff] %v276
      %309 = vst [vmem:[%s181 + $0xa0] sm:$0xff] %v277
      %310 = vst [vmem:[%s181 + $0xa8] sm:$0xff] %v278
      %311 = vst [vmem:[%s181 + $0xb0] sm:$0xff] %v279
      %312 = vst [vmem:[%s181 + $0xb8] sm:$0xff] %v280
      %313 = vst [vmem:[%s181 + $0xc0] sm:$0xff] %v281
      %314 = vst [vmem:[%s181 + $0xc8] sm:$0xff] %v282
      %315 = vst [vmem:[%s181 + $0xd0] sm:$0xff] %v283
      %316 = vst [vmem:[%s181 + $0xd8] sm:$0xff] %v284
      %317 = vst [vmem:[%s181 + $0xe0] sm:$0xff] %v285
      %318 = vst [vmem:[%s181 + $0xe8] sm:$0xff] %v286
      %319 = vst [vmem:[%s181 + $0xf0] sm:$0xff] %v287
      %320 = vst [vmem:[%s181 + $0xf8] sm:$0xff] %v288
      %s321 = smul.u32 32, %s18
      %p322 = scmp.lt.s32.totalorder %s17, 3
      %s323 = scalar_select %p322, %s17, 3
      %p324 = scmp.lt.s32.totalorder %s321, 63
      %s325 = scalar_select %p324, %s321, 63
      %s326 = smul.addr %s323, 64
      %s327 = sadd.s32 %s325, %s326
      %s328 = smul.addr %s327, 8
      %s329 = scalar_lea.vmem %s2, %s328
      // Predicated region
      $region29: #{upconv2d_block.3} parent=27 // pred_check
        %p330 = pneg %p94
      $region30: #{upconv2d_block.3} parent=27 // pred_check_branch
        %332 = sbr.rel (%p330) target = $region32
      $region31: #{upconv2d_block.3} parent=27 // pred_region
        %s333 = smul.u32 32, %s18
      $region32: #{upconv2d_block.3} parent=27 // pred_fallthru
        _
    $region28: #{upconv2d_block.3} parent=5 // pred_fallthru
      _
    %p334 = scmp.le.s32.totalorder 2, %s8
    // Predicated region
    $region33: #{upconv2d_block.3} parent=5 // pred_check
      %p335 = pneg %p334
    $region34: #{upconv2d_block.3} parent=5 // pred_check_branch
      %337 = sbr.rel (%p335) target = $region36
    $region35: #{upconv2d_block.3} parent=5 // pred_region
      %s338 = ssub.s32 %s8, 2
      // Predicated region
      $region37: #{upconv2d_block.3} parent=35 // pred_check
        %p339 = pneg %p100
      $region38: #{upconv2d_block.3} parent=35 // pred_check_branch
        %341 = sbr.rel (%p339) target = $region40
      $region39: #{upconv2d_block.3} parent=35 // pred_region
        %s342 = smul.u32 32, %s20
        %p343 = scmp.lt.s32.totalorder %s19, 3
        %s344 = scalar_select %p343, %s19, 3
        %p345 = scmp.lt.s32.totalorder %s342, 63
        %s346 = scalar_select %p345, %s342, 63
        %s347 = smul.addr %s344, 64
        %s348 = sadd.s32 %s346, %s347
        %s349 = smul.addr %s348, 8
        %s350 = scalar_lea.vmem %s2, %s349
      $region40: #{upconv2d_block.3} parent=35 // pred_fallthru
        _
    $region36: #{upconv2d_block.3} parent=5 // pred_fallthru
      _
  $region6: #{upconv2d_block.3} parent=0 // loop_footer
    %s12 = sadd.s32 1, %s8
  $region7: #{upconv2d_block.3} parent=0 // loop_footer_branch
    %7 = sbr.rel target = $region3
  $region8: #{upconv2d_block.3} parent=0 // loop_exit
    _

// kernel: upconv2d_block.2
$region0: #{upconv2d_block.2}
  #allocation0 [shape = 'u32[]', space=smem, size = 0x4, offset = 0x4, fixed_abs, tag = 'smem constant byte address 0x4 - core index']
  #allocation1 [shape = 'u32[144,128]{1,0:T(1,128)}', space=vmem, size = 0x12000, scoped, tag = 'internal scratch']
  %s0 = inlined_call_operand.vmem [shape: bf16[4,512,16], index: 0, kind: input, shape index: {}]
  %s1 = inlined_call_operand.vmem [shape: bf16[4,16,128], index: 1, kind: input, shape index: {}]
  %s2 = inlined_call_operand.vmem [shape: f32[4,512,128], index: 2, kind: output, shape index: {0}]
  %s3 = inlined_call_operand.vmem [shape: f32[4,2,8,128], index: 3, kind: output, shape index: {1}]
  %s4 = inlined_call_operand.vmem [shape: f32[4,2,8,128], index: 4, kind: output, shape index: {2}]
  %5 = xla_tuple %s2, %s3, %s4
  %s6 = sld [smem:[#allocation0]]
  $region65: #{upconv2d_block.2} parent=0
    _
  %s8 = ssub.s32 1, %s6
  %s9 = scalar_select 0, %s8, %s6
  loop: start=0, step=1, limit=10
  $region2: #{upconv2d_block.2} parent=0 // loop_pre_header
    _
  $region3: #{upconv2d_block.2} parent=0 // loop_header
    %s11 = sphi 0, %s15
    %p12 = scmp.ge.s32.totalorder %s11, 10
    %s18 = sphi 0, %s37
    %s19 = sphi 0, %s33
    %s20 = sphi 0, %s29
    %s21 = sphi 0, %s18
    %s22 = sphi 0, %s19
    %s23 = sphi 0, %s20
    %s24 = sphi 0, %s21
    %s25 = sphi 0, %s22
    %s26 = sphi 0, %s23
    %s44 = sphi 0, %s46
    %s47 = sphi 0, %s44
    %s48 = sphi 0, %s47
    %s64 = sphi 0, %s48
    %s72 = sphi 0, %s74
    %s75 = sphi 0, %s72
    %s76 = sphi 0, %s75
    %s92 = sphi 0, %s76
    %s100 = sphi 0, %s102
    %s103 = sphi 0, %s100
    %s104 = sphi 0, %s103
    %s120 = sphi 0, %s104
    %s128 = sphi 0, %s130
    %s131 = sphi 0, %s128
    %s132 = sphi 0, %s131
    %s148 = sphi 0, %s132
    %s156 = sphi 0, %s158
    %s159 = sphi 0, %s156
    %s160 = sphi 0, %s159
    %s176 = sphi 0, %s160
  $region4: #{upconv2d_block.2} parent=0 // loop_header_branch
    %14 = sbr.rel (%p12) target = $region8
  $region5: #{upconv2d_block.2} parent=0 // loop_body
    %s16 = ssub.s32 %s11, 1
    %s17 = ssub.s32 %s11, 2
    %s27 = sadd.s32 1, %s20
    %p28 = scmp.ge.s32.totalorder %s27, 1
    %s29 = scalar_select %p28, 0, %s27
    %s30 = sadd.s32 1, %s19
    %s31 = scalar_select %p28, %s30, %s19
    %p32 = scmp.ge.s32.totalorder %s31, 2
    %s33 = scalar_select %p32, 0, %s31
    %s34 = sadd.s32 1, %s18
    %s35 = scalar_select %p32, %s34, %s18
    %p36 = scmp.ge.s32.totalorder %s35, 4
    %s37 = scalar_select %p36, 0, %s35
    %s38 = ssub.s32 %s18, %s37
    %s39 = ssub.s32 %s19, %s33
    %s40 = sor.u32 %s38, %s39
    %s41 = ssub.s32 %s20, %s29
    %s42 = sor.u32 %s40, %s41
    %p43 = scmp.eq.s32.totalorder %s42, 0
    %s45 = sadd.s32 %s44, 1
    %s46 = scalar_select %p43, %s44, %s45
    %p49 = pneg %p43
    %p50 = scmp.eq.s32.totalorder %s11, 7
    %p51 = por %p49, %p50
    %p52 = scmp.ne.s32.totalorder %s44, %s47
    %p53 = scmp.eq.s32.totalorder %s11, 0
    %p54 = por %p52, %p53
    %p55 = scmp.ne.s32.totalorder %s44, %s47
    %p56 = scmp.eq.s32.totalorder %s16, 7
    %p57 = por %p55, %p56
    %p58 = scmp.ne.s32.totalorder %s47, %s48
    %p59 = scmp.eq.s32.totalorder %s16, 0
    %p60 = por %p58, %p59
    %p61 = scmp.ne.s32.totalorder %s47, %s48
    %p62 = scmp.eq.s32.totalorder %s17, 7
    %p63 = por %p61, %p62
    %p65 = scmp.ne.s32.totalorder %s48, %s64
    %p66 = scmp.eq.s32.totalorder %s17, 0
    %p67 = por %p65, %p66
    %s68 = ssub.s32 %s18, %s37
    %s69 = ssub.s32 %s20, %s29
    %s70 = sor.u32 %s68, %s69
    %p71 = scmp.eq.s32.totalorder %s70, 0
    %s73 = sadd.s32 %s72, 1
    %s74 = scalar_select %p71, %s72, %s73
    %p77 = pneg %p71
    %p78 = scmp.eq.s32.totalorder %s11, 7
    %p79 = por %p77, %p78
    %p80 = scmp.ne.s32.totalorder %s72, %s75
    %p81 = scmp.eq.s32.totalorder %s11, 0
    %p82 = por %p80, %p81
    %p83 = scmp.ne.s32.totalorder %s72, %s75
    %p84 = scmp.eq.s32.totalorder %s16, 7
    %p85 = por %p83, %p84
    %p86 = scmp.ne.s32.totalorder %s75, %s76
    %p87 = scmp.eq.s32.totalorder %s16, 0
    %p88 = por %p86, %p87
    %p89 = scmp.ne.s32.totalorder %s75, %s76
    %p90 = scmp.eq.s32.totalorder %s17, 7
    %p91 = por %p89, %p90
    %p93 = scmp.ne.s32.totalorder %s76, %s92
    %p94 = scmp.eq.s32.totalorder %s17, 0
    %p95 = por %p93, %p94
    %s96 = ssub.s32 %s18, %s37
    %s97 = ssub.s32 %s19, %s33
    %s98 = sor.u32 %s96, %s97
    %p99 = scmp.eq.s32.totalorder %s98, 0
    %s101 = sadd.s32 %s100, 1
    %s102 = scalar_select %p99, %s100, %s101
    %p105 = pneg %p99
    %p106 = scmp.eq.s32.totalorder %s11, 7
    %p107 = por %p105, %p106
    %p108 = scmp.ne.s32.totalorder %s100, %s103
    %p109 = scmp.eq.s32.totalorder %s11, 0
    %p110 = por %p108, %p109
    %p111 = scmp.ne.s32.totalorder %s100, %s103
    %p112 = scmp.eq.s32.totalorder %s16, 7
    %p113 = por %p111, %p112
    %p114 = scmp.ne.s32.totalorder %s103, %s104
    %p115 = scmp.eq.s32.totalorder %s16, 0
    %p116 = por %p114, %p115
    %p117 = scmp.ne.s32.totalorder %s103, %s104
    %p118 = scmp.eq.s32.totalorder %s17, 7
    %p119 = por %p117, %p118
    %p121 = scmp.ne.s32.totalorder %s104, %s120
    %p122 = scmp.eq.s32.totalorder %s17, 0
    %p123 = por %p121, %p122
    %s124 = ssub.s32 %s18, %s37
    %s125 = ssub.s32 %s19, %s33
    %s126 = sor.u32 %s124, %s125
    %p127 = scmp.eq.s32.totalorder %s126, 0
    %s129 = sadd.s32 %s128, 1
    %s130 = scalar_select %p127, %s128, %s129
    %p133 = pneg %p127
    %p134 = scmp.eq.s32.totalorder %s11, 7
    %p135 = por %p133, %p134
    %p136 = scmp.ne.s32.totalorder %s128, %s131
    %p137 = scmp.eq.s32.totalorder %s11, 0
    %p138 = por %p136, %p137
    %p139 = scmp.ne.s32.totalorder %s128, %s131
    %p140 = scmp.eq.s32.totalorder %s16, 7
    %p141 = por %p139, %p140
    %p142 = scmp.ne.s32.totalorder %s131, %s132
    %p143 = scmp.eq.s32.totalorder %s16, 0
    %p144 = por %p142, %p143
    %p145 = scmp.ne.s32.totalorder %s131, %s132
    %p146 = scmp.eq.s32.totalorder %s17, 7
    %p147 = por %p145, %p146
    %p149 = scmp.ne.s32.totalorder %s132, %s148
    %p150 = scmp.eq.s32.totalorder %s17, 0
    %p151 = por %p149, %p150
    %s152 = ssub.s32 %s18, %s37
    %s153 = ssub.s32 %s19, %s33
    %s154 = sor.u32 %s152, %s153
    %p155 = scmp.eq.s32.totalorder %s154, 0
    %s157 = sadd.s32 %s156, 1
    %s158 = scalar_select %p155, %s156, %s157
    %p161 = pneg %p155
    %p162 = scmp.eq.s32.totalorder %s11, 7
    %p163 = por %p161, %p162
    %p164 = scmp.ne.s32.totalorder %s156, %s159
    %p165 = scmp.eq.s32.totalorder %s11, 0
    %p166 = por %p164, %p165
    %p167 = scmp.ne.s32.totalorder %s156, %s159
    %p168 = scmp.eq.s32.totalorder %s16, 7
    %p169 = por %p167, %p168
    %p170 = scmp.ne.s32.totalorder %s159, %s160
    %p171 = scmp.eq.s32.totalorder %s16, 0
    %p172 = por %p170, %p171
    %p173 = scmp.ne.s32.totalorder %s159, %s160
    %p174 = scmp.eq.s32.totalorder %s17, 7
    %p175 = por %p173, %p174
    %p177 = scmp.ne.s32.totalorder %s160, %s176
    %p178 = scmp.eq.s32.totalorder %s17, 0
    %p179 = por %p177, %p178
    %p180 = scmp.le.s32.totalorder 1, %s11
    %p181 = scmp.lt.s32.totalorder %s11, 9
    %p182 = pnand %p180, %p181
    %p183 = pneg %p182
    // Predicated region
    $region9: #{upconv2d_block.2} parent=5 // pred_check
      _
    $region10: #{upconv2d_block.2} parent=5 // pred_check_branch
      %185 = sbr.rel (%p182) target = $region12
    $region11: #{upconv2d_block.2} parent=5 // pred_region
      %s186 = ssub.s32 %s11, 1
    $region12: #{upconv2d_block.2} parent=5 // pred_fallthru
      _
    %p187 = scmp.lt.s32.totalorder %s11, 8
    // Predicated region
    $region13: #{upconv2d_block.2} parent=5 // pred_check
      %p188 = pneg %p187
    $region14: #{upconv2d_block.2} parent=5 // pred_check_branch
      %190 = sbr.rel (%p188) target = $region16
    $region15: #{upconv2d_block.2} parent=5 // pred_region
      // Predicated region
      $region17: #{upconv2d_block.2} parent=15 // pred_check
        %p191 = pneg %p54
      $region18: #{upconv2d_block.2} parent=15 // pred_check_branch
        %193 = sbr.rel (%p191) target = $region20
      $region19: #{upconv2d_block.2} parent=15 // pred_region
        %s194 = smul.u32 32, %s19
        %p195 = scmp.lt.s32.totalorder %s18, 3
        %s196 = scalar_select %p195, %s18, 3
        %p197 = scmp.lt.s32.totalorder %s194, 63
        %s198 = scalar_select %p197, %s194, 63
        %p199 = scmp.lt.s32.totalorder %s20, 0
        %s200 = scalar_select %p199, %s20, 0
        %s201 = sadd.s32 %s200, %s198
        %s202 = smul.addr %s196, 64
        %s203 = sadd.s32 %s201, %s202
        %s204 = smul.addr %s203, 4
        %s205 = scalar_lea.vmem %s0, %s204
        %s206 = smul.u32 32, %s19
      $region20: #{upconv2d_block.2} parent=15 // pred_fallthru
        _
      // Predicated region
      $region21: #{upconv2d_block.2} parent=15 // pred_check
        %p207 = pneg %p82
      $region22: #{upconv2d_block.2} parent=15 // pred_check_branch
        %209 = sbr.rel (%p207) target = $region24
      $region23: #{upconv2d_block.2} parent=15 // pred_region
        %s210 = smul.u32 2, %s20
        %p211 = scmp.lt.s32.totalorder %s18, 3
        %s212 = scalar_select %p211, %s18, 3
        %p213 = scmp.lt.s32.totalorder %s210, 1
        %s214 = scalar_select %p213, %s210, 1
        %s215 = smul.addr %s212, 2
        %s216 = sadd.s32 %s214, %s215
        %s217 = smul.addr %s216, 4
        %s218 = scalar_lea.vmem %s1, %s217
        %s219 = smul.u32 2, %s20
      $region24: #{upconv2d_block.2} parent=15 // pred_fallthru
        _
    $region16: #{upconv2d_block.2} parent=5 // pred_fallthru
      _
    %p220 = scmp.le.s32.totalorder 1, %s11
    %p221 = scmp.lt.s32.totalorder %s11, 9
    %p222 = pnand %p220, %p221
    %p223 = pneg %p222
    // Predicated region
    $region25: #{upconv2d_block.2} parent=5 // pred_check
      _
    $region26: #{upconv2d_block.2} parent=5 // pred_check_branch
      %225 = sbr.rel (%p222) target = $region28
    $region27: #{upconv2d_block.2} parent=5 // pred_region
      %s226 = ssub.s32 %s11, 1
      %s227 = smul.u32 32, %s22
      %p228 = scmp.lt.s32.totalorder %s21, 3
      %s229 = scalar_select %p228, %s21, 3
      %p230 = scmp.lt.s32.totalorder %s227, 63
      %s231 = scalar_select %p230, %s227, 63
      %p232 = scmp.lt.s32.totalorder %s23, 0
      %s233 = scalar_select %p232, %s23, 0
      %s234 = sadd.s32 %s233, %s231
      %s235 = smul.addr %s229, 64
      %s236 = sadd.s32 %s234, %s235
      %s237 = smul.addr %s236, 4
      %s238 = scalar_lea.vmem %s0, %s237
      %p239 = pneg %p60
      %p240 = pneg %p57
      %s241 = smul.u32 2, %s23
      %p242 = scmp.lt.s32.totalorder %s21, 3
      %s243 = scalar_select %p242, %s21, 3
      %p244 = scmp.lt.s32.totalorder %s241, 1
      %s245 = scalar_select %p244, %s241, 1
      %s246 = smul.addr %s243, 2
      %s247 = sadd.s32 %s245, %s246
      %s248 = smul.addr %s247, 4
      %s249 = scalar_lea.vmem %s1, %s248
      %p250 = pneg %p88
      %p251 = pneg %p85
      %p252 = pneg %p116
      %p253 = pneg %p113
      %s254 = smul.u32 32, %s22
      %p255 = scmp.lt.s32.totalorder %s21, 3
      %s256 = scalar_select %p255, %s21, 3
      %p257 = scmp.lt.s32.totalorder %s254, 63
      %s258 = scalar_select %p257, %s254, 63
      %s259 = smul.addr %s256, 64
      %s260 = sadd.s32 %s258, %s259
      %s261 = smul.addr %s260, 8
      %s262 = scalar_lea.vmem %s2, %s261
      %p263 = pneg %p144
      %p264 = pneg %p141
      %p265 = scmp.lt.s32.totalorder %s21, 3
      %s266 = scalar_select %p265, %s21, 3
      %p267 = scmp.lt.s32.totalorder %s22, 1
      %s268 = scalar_select %p267, %s22, 1
      %s269 = smul.addr %s266, 2
      %s270 = sadd.s32 %s268, %s269
      %s271 = smul.addr %s270, 8
      %s272 = scalar_lea.vmem %s3, %s271
      %p273 = pneg %p172
      %p274 = pneg %p169
      %p275 = scmp.lt.s32.totalorder %s21, 3
      %s276 = scalar_select %p275, %s21, 3
      %p277 = scmp.lt.s32.totalorder %s22, 1
      %s278 = scalar_select %p277, %s22, 1
      %s279 = smul.addr %s276, 2
      %s280 = sadd.s32 %s278, %s279
      %s281 = smul.addr %s280, 8
      %s282 = scalar_lea.vmem %s4, %s281
      %s283 = smul.u32 32, %s22
      %p284 = scmp.lt.s32.totalorder %s21, 3
      %s285 = scalar_select %p284, %s21, 3
      %p286 = scmp.lt.s32.totalorder %s283, 63
      %s287 = scalar_select %p286, %s283, 63
      %p288 = scmp.lt.s32.totalorder %s23, 0
      %s289 = scalar_select %p288, %s23, 0
      %s290 = sadd.s32 %s289, %s287
      %s291 = smul.addr %s285, 64
      %s292 = sadd.s32 %s290, %s291
      %s293 = smul.addr %s292, 4
      %s294 = scalar_lea.vmem %s0, %s293
      %s295 = smul.u32 32, %s22
      %s296 = smul.u32 2, %s23
      %p297 = scmp.lt.s32.totalorder %s21, 3
      %s298 = scalar_select %p297, %s21, 3
      %p299 = scmp.lt.s32.totalorder %s296, 1
      %s300 = scalar_select %p299, %s296, 1
      %s301 = smul.addr %s298, 2
      %s302 = sadd.s32 %s300, %s301
      %s303 = smul.addr %s302, 4
      %s304 = scalar_lea.vmem %s1, %s303
      %s305 = smul.u32 2, %s23
      %s306 = smul.u32 32, %s22
      %p307 = scmp.lt.s32.totalorder %s21, 3
      %s308 = scalar_select %p307, %s21, 3
      %p309 = scmp.lt.s32.totalorder %s306, 63
      %s310 = scalar_select %p309, %s306, 63
      %s311 = smul.addr %s308, 64
      %s312 = sadd.s32 %s310, %s311
      %s313 = smul.addr %s312, 8
      %s314 = scalar_lea.vmem %s2, %s313
      %s315 = smul.u32 32, %s22
      %p316 = scmp.lt.s32.totalorder %s21, 3
      %s317 = scalar_select %p316, %s21, 3
      %p318 = scmp.lt.s32.totalorder %s22, 1
      %s319 = scalar_select %p318, %s22, 1
      %s320 = smul.addr %s317, 2
      %s321 = sadd.s32 %s319, %s320
      %s322 = smul.addr %s321, 8
      %s323 = scalar_lea.vmem %s3, %s322
      %p324 = scmp.lt.s32.totalorder %s21, 3
      %s325 = scalar_select %p324, %s21, 3
      %p326 = scmp.lt.s32.totalorder %s22, 1
      %s327 = scalar_select %p326, %s22, 1
      %s328 = smul.addr %s325, 2
      %s329 = sadd.s32 %s327, %s328
      %s330 = smul.addr %s329, 8
      %s331 = scalar_lea.vmem %s4, %s330
      %p333 = scmp.eq.s32.totalorder %s23, 0
      // Predicated region
      $region29: #{upconv2d_block.2} parent=27 // pred_check
        %p334 = pneg %p333
      $region30: #{upconv2d_block.2} parent=27 // pred_check_branch
        %336 = sbr.rel (%p334) target = $region32
      $region31: #{upconv2d_block.2} parent=27 // pred_region
        %337 = vst [vmem:[%s314] sm:$0xff] 0.0
        %338 = vst [vmem:[%s314 + $0x8] sm:$0xff] 0.0
        %339 = vst [vmem:[%s314 + $0x10] sm:$0xff] 0.0
        %340 = vst [vmem:[%s314 + $0x18] sm:$0xff] 0.0
        %341 = vst [vmem:[%s314 + $0x20] sm:$0xff] 0.0
        %342 = vst [vmem:[%s314 + $0x28] sm:$0xff] 0.0
        %343 = vst [vmem:[%s314 + $0x30] sm:$0xff] 0.0
        %344 = vst [vmem:[%s314 + $0x38] sm:$0xff] 0.0
        %345 = vst [vmem:[%s314 + $0x40] sm:$0xff] 0.0
        %346 = vst [vmem:[%s314 + $0x48] sm:$0xff] 0.0
        %347 = vst [vmem:[%s314 + $0x50] sm:$0xff] 0.0
        %348 = vst [vmem:[%s314 + $0x58] sm:$0xff] 0.0
        %349 = vst [vmem:[%s314 + $0x60] sm:$0xff] 0.0
        %350 = vst [vmem:[%s314 + $0x68] sm:$0xff] 0.0
        %351 = vst [vmem:[%s314 + $0x70] sm:$0xff] 0.0
        %352 = vst [vmem:[%s314 + $0x78] sm:$0xff] 0.0
        %353 = vst [vmem:[%s314 + $0x80] sm:$0xff] 0.0
        %354 = vst [vmem:[%s314 + $0x88] sm:$0xff] 0.0
        %355 = vst [vmem:[%s314 + $0x90] sm:$0xff] 0.0
        %356 = vst [vmem:[%s314 + $0x98] sm:$0xff] 0.0
        %357 = vst [vmem:[%s314 + $0xa0] sm:$0xff] 0.0
        %358 = vst [vmem:[%s314 + $0xa8] sm:$0xff] 0.0
        %359 = vst [vmem:[%s314 + $0xb0] sm:$0xff] 0.0
        %360 = vst [vmem:[%s314 + $0xb8] sm:$0xff] 0.0
        %361 = vst [vmem:[%s314 + $0xc0] sm:$0xff] 0.0
        %362 = vst [vmem:[%s314 + $0xc8] sm:$0xff] 0.0
        %363 = vst [vmem:[%s314 + $0xd0] sm:$0xff] 0.0
        %364 = vst [vmem:[%s314 + $0xd8] sm:$0xff] 0.0
        %365 = vst [vmem:[%s314 + $0xe0] sm:$0xff] 0.0
        %366 = vst [vmem:[%s314 + $0xe8] sm:$0xff] 0.0
        %367 = vst [vmem:[%s314 + $0xf0] sm:$0xff] 0.0
        %368 = vst [vmem:[%s314 + $0xf8] sm:$0xff] 0.0
      $region32: #{upconv2d_block.2} parent=27 // pred_fallthru
        _
      %v369 = vld [vmem:[%s314] sm:$0xff]
      %v370 = vld [vmem:[%s314 + $0x8] sm:$0xff]
      %v371 = vld [vmem:[%s314 + $0x10] sm:$0xff]
      %v372 = vld [vmem:[%s314 + $0x18] sm:$0xff]
      %v373 = vld [vmem:[%s314 + $0x20] sm:$0xff]
      %v374 = vld [vmem:[%s314 + $0x28] sm:$0xff]
      %v375 = vld [vmem:[%s314 + $0x30] sm:$0xff]
      %v376 = vld [vmem:[%s314 + $0x38] sm:$0xff]
      %v377 = vld [vmem:[%s314 + $0x40] sm:$0xff]
      %v378 = vld [vmem:[%s314 + $0x48] sm:$0xff]
      %v379 = vld [vmem:[%s314 + $0x50] sm:$0xff]
      %v380 = vld [vmem:[%s314 + $0x58] sm:$0xff]
      %v381 = vld [vmem:[%s314 + $0x60] sm:$0xff]
      %v382 = vld [vmem:[%s314 + $0x68] sm:$0xff]
      %v383 = vld [vmem:[%s314 + $0x70] sm:$0xff]
      %v384 = vld [vmem:[%s314 + $0x78] sm:$0xff]
      %v385 = vld [vmem:[%s314 + $0x80] sm:$0xff]
      %v386 = vld [vmem:[%s314 + $0x88] sm:$0xff]
      %v387 = vld [vmem:[%s314 + $0x90] sm:$0xff]
      %v388 = vld [vmem:[%s314 + $0x98] sm:$0xff]
      %v389 = vld [vmem:[%s314 + $0xa0] sm:$0xff]
      %v390 = vld [vmem:[%s314 + $0xa8] sm:$0xff]
      %v391 = vld [vmem:[%s314 + $0xb0] sm:$0xff]
      %v392 = vld [vmem:[%s314 + $0xb8] sm:$0xff]
      %v393 = vld [vmem:[%s314 + $0xc0] sm:$0xff]
      %v394 = vld [vmem:[%s314 + $0xc8] sm:$0xff]
      %v395 = vld [vmem:[%s314 + $0xd0] sm:$0xff]
      %v396 = vld [vmem:[%s314 + $0xd8] sm:$0xff]
      %v397 = vld [vmem:[%s314 + $0xe0] sm:$0xff]
      %v398 = vld [vmem:[%s314 + $0xe8] sm:$0xff]
      %v399 = vld [vmem:[%s314 + $0xf0] sm:$0xff]
      %v400 = vld [vmem:[%s314 + $0xf8] sm:$0xff]
      %v401 = vld [vmem:[%s294] sm:$0xf]
      %v402 = vld [vmem:[%s294 + $0x4] sm:$0xf]
      %v403 = vld [vmem:[%s294 + $0x8] sm:$0xf]
      %v404 = vld [vmem:[%s294 + $0xc] sm:$0xf]
      %v405 = vld [vmem:[%s294 + $0x10] sm:$0xf]
      %v406 = vld [vmem:[%s294 + $0x14] sm:$0xf]
      %v407 = vld [vmem:[%s294 + $0x18] sm:$0xf]
      %v408 = vld [vmem:[%s294 + $0x1c] sm:$0xf]
      %v409 = vld [vmem:[%s294 + $0x20] sm:$0xf]
      %v410 = vld [vmem:[%s294 + $0x24] sm:$0xf]
      %v411 = vld [vmem:[%s294 + $0x28] sm:$0xf]
      %v412 = vld [vmem:[%s294 + $0x2c] sm:$0xf]
      %v413 = vld [vmem:[%s294 + $0x30] sm:$0xf]
      %v414 = vld [vmem:[%s294 + $0x34] sm:$0xf]
      %v415 = vld [vmem:[%s294 + $0x38] sm:$0xf]
      %v416 = vld [vmem:[%s294 + $0x3c] sm:$0xf]
      %v417 = vld [vmem:[%s294 + $0x40] sm:$0xf]
      %v418 = vld [vmem:[%s294 + $0x44] sm:$0xf]
      %v419 = vld [vmem:[%s294 + $0x48] sm:$0xf]
      %v420 = vld [vmem:[%s294 + $0x4c] sm:$0xf]
      %v421 = vld [vmem:[%s294 + $0x50] sm:$0xf]
      %v422 = vld [vmem:[%s294 + $0x54] sm:$0xf]
      %v423 = vld [vmem:[%s294 + $0x58] sm:$0xf]
      %v424 = vld [vmem:[%s294 + $0x5c] sm:$0xf]
      %v425 = vld [vmem:[%s294 + $0x60] sm:$0xf]
      %v426 = vld [vmem:[%s294 + $0x64] sm:$0xf]
      %v427 = vld [vmem:[%s294 + $0x68] sm:$0xf]
      %v428 = vld [vmem:[%s294 + $0x6c] sm:$0xf]
      %v429 = vld [vmem:[%s294 + $0x70] sm:$0xf]
      %v430 = vld [vmem:[%s294 + $0x74] sm:$0xf]
      %v431 = vld [vmem:[%s294 + $0x78] sm:$0xf]
      %v432 = vld [vmem:[%s294 + $0x7c] sm:$0xf]
      %v433 = vld [vmem:[%s304] sm:$0xf]
      %v434 = vld [vmem:[%s304 + $0x4] sm:$0xf]
      %v467 = vunpack.c.l.b16 %v401
      %v468 = vunpack.c.l.b16 %v402
      %v469 = vunpack.c.l.b16 %v403
      %v470 = vunpack.c.l.b16 %v404
      %v471 = vunpack.c.l.b16 %v405
      %v472 = vunpack.c.l.b16 %v406
      %v473 = vunpack.c.l.b16 %v407
      %v474 = vunpack.c.l.b16 %v408
      %v475 = vunpack.c.l.b16 %v409
      %v476 = vunpack.c.l.b16 %v410
      %v477 = vunpack.c.l.b16 %v411
      %v478 = vunpack.c.l.b16 %v412
      %v479 = vunpack.c.l.b16 %v413
      %v480 = vunpack.c.l.b16 %v414
      %v481 = vunpack.c.l.b16 %v415
      %v482 = vunpack.c.l.b16 %v416
      %v483 = vunpack.c.l.b16 %v417
      %v484 = vunpack.c.l.b16 %v418
      %v485 = vunpack.c.l.b16 %v419
      %v486 = vunpack.c.l.b16 %v420
      %v487 = vunpack.c.l.b16 %v421
      %v488 = vunpack.c.l.b16 %v422
      %v489 = vunpack.c.l.b16 %v423
      %v490 = vunpack.c.l.b16 %v424
      %v491 = vunpack.c.l.b16 %v425
      %v492 = vunpack.c.l.b16 %v426
      %v493 = vunpack.c.l.b16 %v427
      %v494 = vunpack.c.l.b16 %v428
      %v495 = vunpack.c.l.b16 %v429
      %v496 = vunpack.c.l.b16 %v430
      %v497 = vunpack.c.l.b16 %v431
      %v498 = vunpack.c.l.b16 %v432
      %v499 = vpack.c.b16 %v468, %v467
      %v500 = vpack.c.b16 %v470, %v469
      %v501 = vpack.c.b16 %v472, %v471
      %v502 = vpack.c.b16 %v474, %v473
      %v503 = vpack.c.b16 %v476, %v475
      %v504 = vpack.c.b16 %v478, %v477
      %v505 = vpack.c.b16 %v480, %v479
      %v506 = vpack.c.b16 %v482, %v481
      %v507 = vpack.c.b16 %v484, %v483
      %v508 = vpack.c.b16 %v486, %v485
      %v509 = vpack.c.b16 %v488, %v487
      %v510 = vpack.c.b16 %v490, %v489
      %v511 = vpack.c.b16 %v492, %v491
      %v512 = vpack.c.b16 %v494, %v493
      %v513 = vpack.c.b16 %v496, %v495
      %v514 = vpack.c.b16 %v498, %v497
      %v517 = vunpack.c.l.b16 %v433
      %v518 = vunpack.c.l.b16 %v434
      %v519 = vpack.c.b16 %v518, %v517
      %vm521 = vcmask 130048
      %v523 = vsel %vm521, %v499, 0
      %v526 = vsel %vm521, %v500, 0
      %v529 = vsel %vm521, %v501, 0
      %v532 = vsel %vm521, %v502, 0
      %v535 = vsel %vm521, %v503, 0
      %v538 = vsel %vm521, %v504, 0
      %v541 = vsel %vm521, %v505, 0
      %v544 = vsel %vm521, %v506, 0
      %v547 = vsel %vm521, %v507, 0
      %v550 = vsel %vm521, %v508, 0
      %v553 = vsel %vm521, %v509, 0
      %v556 = vsel %vm521, %v510, 0
      %v559 = vsel %vm521, %v511, 0
      %v562 = vsel %vm521, %v512, 0
      %v565 = vsel %vm521, %v513, 0
      %v568 = vsel %vm521, %v514, 0
      %570 = vmatprep.subr.bf16.mxu0 0
      %571 = vmatpush1.bf16.msra.mxu0 0
      %572 = vmatprep.subr.bf16.mxu0 0
      %573 = vmatpush1.bf16.msra.mxu0 0
      %574 = vmatprep.subr.bf16.mxu0 0
      %575 = vmatpush1.bf16.msra.mxu0 0
      %576 = vmatprep.subr.bf16.mxu0 0
      %577 = vmatpush1.bf16.msra.mxu0 0
      %578 = vmatprep.subr.bf16.mxu0 0
      %579 = vmatpush1.bf16.msra.mxu0 0
      %580 = vmatprep.subr.bf16.mxu0 0
      %581 = vmatpush1.bf16.msra.mxu0 0
      %582 = vmatprep.subr.bf16.mxu0 0
      %583 = vmatpush1.bf16.msra.mxu0 0
      %584 = vmatprep.subr.bf16.mxu0 0
      %585 = vmatpush1.bf16.msra.mxu0 %v519
      %586 = vmatprep.subr.bf16.mxu0 0
      %587 = vmatpush2.bf16.msra.mxu0 0
      %588 = vmatprep.subr.bf16.mxu0 0
      %589 = vmatpush2.bf16.msra.mxu0 0
      %590 = vmatprep.subr.bf16.mxu0 0
      %591 = vmatpush2.bf16.msra.mxu0 0
      %592 = vmatprep.subr.bf16.mxu0 0
      %593 = vmatpush2.bf16.msra.mxu0 0
      %594 = vmatprep.subr.bf16.mxu0 0
      %595 = vmatpush2.bf16.msra.mxu0 0
      %596 = vmatprep.subr.bf16.mxu0 0
      %597 = vmatpush2.bf16.msra.mxu0 0
      %598 = vmatprep.subr.bf16.mxu0 0
      %599 = vmatpush2.bf16.msra.mxu0 0
      %600 = vmatprep.subr.bf16.mxu0 0
      %601 = vmatpush2.bf16.msra.mxu0 0
      %602 = vmatprep.mubr.bf16.mxu0 0
      %603 = vmatmul.mubr.bf16.gmra.mxu0 %v523
      %v604 = vpop.f32.mrf.mxu0
      %v605 = vadd.f32 0.0, %v604
      %v606 = vpop.f32.mrf.mxu0
      %v607 = vpop.f32.mrf.mxu0
      %v608 = vadd.f32 0.0, %v607
      %v609 = vpop.f32.mrf.mxu0
      %610 = vmatprep.mubr.bf16.mxu0 0
      %611 = vmatmul.mubr.bf16.gmra.mxu0 %v526
      %v612 = vpop.f32.mrf.mxu0
      %v613 = vadd.f32 0.0, %v612
      %v614 = vpop.f32.mrf.mxu0
      %v615 = vpop.f32.mrf.mxu0
      %v616 = vadd.f32 0.0, %v615
      %v617 = vpop.f32.mrf.mxu0
      %618 = vmatprep.mubr.bf16.mxu0 0
      %619 = vmatmul.mubr.bf16.gmra.mxu0 %v529
      %v620 = vpop.f32.mrf.mxu0
      %v621 = vadd.f32 0.0, %v620
      %v622 = vpop.f32.mrf.mxu0
      %v623 = vpop.f32.mrf.mxu0
      %v624 = vadd.f32 0.0, %v623
      %v625 = vpop.f32.mrf.mxu0
      %626 = vmatprep.mubr.bf16.mxu0 0
      %627 = vmatmul.mubr.bf16.gmra.mxu0 %v532
      %v628 = vpop.f32.mrf.mxu0
      %v629 = vadd.f32 0.0, %v628
      %v630 = vpop.f32.mrf.mxu0
      %v631 = vpop.f32.mrf.mxu0
      %v632 = vadd.f32 0.0, %v631
      %v633 = vpop.f32.mrf.mxu0
      %634 = vmatprep.mubr.bf16.mxu0 0
      %635 = vmatmul.mubr.bf16.gmra.mxu0 %v535
      %v636 = vpop.f32.mrf.mxu0
      %v637 = vadd.f32 0.0, %v636
      %v638 = vpop.f32.mrf.mxu0
      %v639 = vpop.f32.mrf.mxu0
      %v640 = vadd.f32 0.0, %v639
      %v641 = vpop.f32.mrf.mxu0
      %642 = vmatprep.mubr.bf16.mxu0 0
      %643 = vmatmul.mubr.bf16.gmra.mxu0 %v538
      %v644 = vpop.f32.mrf.mxu0
      %v645 = vadd.f32 0.0, %v644
      %v646 = vpop.f32.mrf.mxu0
      %v647 = vpop.f32.mrf.mxu0
      %v648 = vadd.f32 0.0, %v647
      %v649 = vpop.f32.mrf.mxu0
      %650 = vmatprep.mubr.bf16.mxu0 0
      %651 = vmatmul.mubr.bf16.gmra.mxu0 %v541
      %v652 = vpop.f32.mrf.mxu0
      %v653 = vadd.f32 0.0, %v652
      %v654 = vpop.f32.mrf.mxu0
      %v655 = vpop.f32.mrf.mxu0
      %v656 = vadd.f32 0.0, %v655
      %v657 = vpop.f32.mrf.mxu0
      %658 = vmatprep.mubr.bf16.mxu0 0
      %659 = vmatmul.mubr.bf16.gmra.mxu0 %v544
      %v660 = vpop.f32.mrf.mxu0
      %v661 = vadd.f32 0.0, %v660
      %v662 = vpop.f32.mrf.mxu0
      %v663 = vpop.f32.mrf.mxu0
      %v664 = vadd.f32 0.0, %v663
      %v665 = vpop.f32.mrf.mxu0
      %666 = vmatprep.mubr.bf16.mxu0 0
      %667 = vmatmul.mubr.bf16.gmra.mxu0 %v547
      %v668 = vpop.f32.mrf.mxu0
      %v669 = vadd.f32 0.0, %v668
      %v670 = vpop.f32.mrf.mxu0
      %v671 = vpop.f32.mrf.mxu0
      %v672 = vadd.f32 0.0, %v671
      %v673 = vpop.f32.mrf.mxu0
      %674 = vmatprep.mubr.bf16.mxu0 0
      %675 = vmatmul.mubr.bf16.gmra.mxu0 %v550
      %v676 = vpop.f32.mrf.mxu0
      %v677 = vadd.f32 0.0, %v676
      %v678 = vpop.f32.mrf.mxu0
      %v679 = vpop.f32.mrf.mxu0
      %v680 = vadd.f32 0.0, %v679
      %v681 = vpop.f32.mrf.mxu0
      %682 = vmatprep.mubr.bf16.mxu0 0
      %683 = vmatmul.mubr.bf16.gmra.mxu0 %v553
      %v684 = vpop.f32.mrf.mxu0
      %v685 = vadd.f32 0.0, %v684
      %v686 = vpop.f32.mrf.mxu0
      %v687 = vpop.f32.mrf.mxu0
      %v688 = vadd.f32 0.0, %v687
      %v689 = vpop.f32.mrf.mxu0
      %690 = vmatprep.mubr.bf16.mxu0 0
      %691 = vmatmul.mubr.bf16.gmra.mxu0 %v556
      %v692 = vpop.f32.mrf.mxu0
      %v693 = vadd.f32 0.0, %v692
      %v694 = vpop.f32.mrf.mxu0
      %v695 = vpop.f32.mrf.mxu0
      %v696 = vadd.f32 0.0, %v695
      %v697 = vpop.f32.mrf.mxu0
      %698 = vmatprep.mubr.bf16.mxu0 0
      %699 = vmatmul.mubr.bf16.gmra.mxu0 %v559
      %v700 = vpop.f32.mrf.mxu0
      %v701 = vadd.f32 0.0, %v700
      %v702 = vpop.f32.mrf.mxu0
      %v703 = vpop.f32.mrf.mxu0
      %v704 = vadd.f32 0.0, %v703
      %v705 = vpop.f32.mrf.mxu0
      %706 = vmatprep.mubr.bf16.mxu0 0
      %707 = vmatmul.mubr.bf16.gmra.mxu0 %v562
      %v708 = vpop.f32.mrf.mxu0
      %v709 = vadd.f32 0.0, %v708
      %v710 = vpop.f32.mrf.mxu0
      %v711 = vpop.f32.mrf.mxu0
      %v712 = vadd.f32 0.0, %v711
      %v713 = vpop.f32.mrf.mxu0
      %714 = vmatprep.mubr.bf16.mxu0 0
      %715 = vmatmul.mubr.bf16.gmra.mxu0 %v565
      %v716 = vpop.f32.mrf.mxu0
      %v717 = vadd.f32 0.0, %v716
      %v718 = vpop.f32.mrf.mxu0
      %v719 = vpop.f32.mrf.mxu0
      %v720 = vadd.f32 0.0, %v719
      %v721 = vpop.f32.mrf.mxu0
      %722 = vmatprep.mubr.bf16.mxu0 0
      %723 = vmatmul.mubr.bf16.gmra.mxu0 %v568
      %v724 = vpop.f32.mrf.mxu0
      %v725 = vadd.f32 0.0, %v724
      %v726 = vpop.f32.mrf.mxu0
      %v727 = vpop.f32.mrf.mxu0
      %v728 = vadd.f32 0.0, %v727
      %v729 = vpop.f32.mrf.mxu0
      %730 = vdwg.mxu0
      %v731 = vadd.f32 %v369, %v605
      %v732 = vadd.f32 %v370, %v608
      %v733 = vadd.f32 %v371, %v613
      %v734 = vadd.f32 %v372, %v616
      %v735 = vadd.f32 %v373, %v621
      %v736 = vadd.f32 %v374, %v624
      %v737 = vadd.f32 %v375, %v629
      %v738 = vadd.f32 %v376, %v632
      %v739 = vadd.f32 %v377, %v637
      %v740 = vadd.f32 %v378, %v640
      %v741 = vadd.f32 %v379, %v645
      %v742 = vadd.f32 %v380, %v648
      %v743 = vadd.f32 %v381, %v653
      %v744 = vadd.f32 %v382, %v656
      %v745 = vadd.f32 %v383, %v661
      %v746 = vadd.f32 %v384, %v664
      %v747 = vadd.f32 %v385, %v669
      %v748 = vadd.f32 %v386, %v672
      %v749 = vadd.f32 %v387, %v677
      %v750 = vadd.f32 %v388, %v680
      %v751 = vadd.f32 %v389, %v685
      %v752 = vadd.f32 %v390, %v688
      %v753 = vadd.f32 %v391, %v693
      %v754 = vadd.f32 %v392, %v696
      %v755 = vadd.f32 %v393, %v701
      %v756 = vadd.f32 %v394, %v704
      %v757 = vadd.f32 %v395, %v709
      %v758 = vadd.f32 %v396, %v712
      %v759 = vadd.f32 %v397, %v717
      %v760 = vadd.f32 %v398, %v720
      %v761 = vadd.f32 %v399, %v725
      %v762 = vadd.f32 %v400, %v728
      %763 = vst [vmem:[%s314] sm:$0xff] %v731
      %764 = vst [vmem:[%s314 + $0x8] sm:$0xff] %v732
      %765 = vst [vmem:[%s314 + $0x10] sm:$0xff] %v733
      %766 = vst [vmem:[%s314 + $0x18] sm:$0xff] %v734
      %767 = vst [vmem:[%s314 + $0x20] sm:$0xff] %v735
      %768 = vst [vmem:[%s314 + $0x28] sm:$0xff] %v736
      %769 = vst [vmem:[%s314 + $0x30] sm:$0xff] %v737
      %770 = vst [vmem:[%s314 + $0x38] sm:$0xff] %v738
      %771 = vst [vmem:[%s314 + $0x40] sm:$0xff] %v739
      %772 = vst [vmem:[%s314 + $0x48] sm:$0xff] %v740
      %773 = vst [vmem:[%s314 + $0x50] sm:$0xff] %v741
      %774 = vst [vmem:[%s314 + $0x58] sm:$0xff] %v742
      %775 = vst [vmem:[%s314 + $0x60] sm:$0xff] %v743
      %776 = vst [vmem:[%s314 + $0x68] sm:$0xff] %v744
      %777 = vst [vmem:[%s314 + $0x70] sm:$0xff] %v745
      %778 = vst [vmem:[%s314 + $0x78] sm:$0xff] %v746
      %779 = vst [vmem:[%s314 + $0x80] sm:$0xff] %v747
      %780 = vst [vmem:[%s314 + $0x88] sm:$0xff] %v748
      %781 = vst [vmem:[%s314 + $0x90] sm:$0xff] %v749
      %782 = vst [vmem:[%s314 + $0x98] sm:$0xff] %v750
      %783 = vst [vmem:[%s314 + $0xa0] sm:$0xff] %v751
      %784 = vst [vmem:[%s314 + $0xa8] sm:$0xff] %v752
      %785 = vst [vmem:[%s314 + $0xb0] sm:$0xff] %v753
      %786 = vst [vmem:[%s314 + $0xb8] sm:$0xff] %v754
      %787 = vst [vmem:[%s314 + $0xc0] sm:$0xff] %v755
      %788 = vst [vmem:[%s314 + $0xc8] sm:$0xff] %v756
      %789 = vst [vmem:[%s314 + $0xd0] sm:$0xff] %v757
      %790 = vst [vmem:[%s314 + $0xd8] sm:$0xff] %v758
      %791 = vst [vmem:[%s314 + $0xe0] sm:$0xff] %v759
      %792 = vst [vmem:[%s314 + $0xe8] sm:$0xff] %v760
      %793 = vst [vmem:[%s314 + $0xf0] sm:$0xff] %v761
      %794 = vst [vmem:[%s314 + $0xf8] sm:$0xff] %v762
      // Predicated region
      $region33: #{upconv2d_block.2} parent=27 // pred_check
        %p795 = pneg %p333
      $region34: #{upconv2d_block.2} parent=27 // pred_check_branch
        %797 = sbr.rel (%p795) target = $region36
      $region35: #{upconv2d_block.2} parent=27 // pred_region
        %v798 = vld [vmem:[%s314] sm:$0xff]
        %v799 = vld [vmem:[%s314 + $0x8] sm:$0xff]
        %v800 = vld [vmem:[%s314 + $0x10] sm:$0xff]
        %v801 = vld [vmem:[%s314 + $0x18] sm:$0xff]
        %v802 = vld [vmem:[%s314 + $0x20] sm:$0xff]
        %v803 = vld [vmem:[%s314 + $0x28] sm:$0xff]
        %v804 = vld [vmem:[%s314 + $0x30] sm:$0xff]
        %v805 = vld [vmem:[%s314 + $0x38] sm:$0xff]
        %v806 = vld [vmem:[%s314 + $0x40] sm:$0xff]
        %v807 = vld [vmem:[%s314 + $0x48] sm:$0xff]
        %v808 = vld [vmem:[%s314 + $0x50] sm:$0xff]
        %v809 = vld [vmem:[%s314 + $0x58] sm:$0xff]
        %v810 = vld [vmem:[%s314 + $0x60] sm:$0xff]
        %v811 = vld [vmem:[%s314 + $0x68] sm:$0xff]
        %v812 = vld [vmem:[%s314 + $0x70] sm:$0xff]
        %v813 = vld [vmem:[%s314 + $0x78] sm:$0xff]
        %v814 = vld [vmem:[%s314 + $0x80] sm:$0xff]
        %v815 = vld [vmem:[%s314 + $0x88] sm:$0xff]
        %v816 = vld [vmem:[%s314 + $0x90] sm:$0xff]
        %v817 = vld [vmem:[%s314 + $0x98] sm:$0xff]
        %v818 = vld [vmem:[%s314 + $0xa0] sm:$0xff]
        %v819 = vld [vmem:[%s314 + $0xa8] sm:$0xff]
        %v820 = vld [vmem:[%s314 + $0xb0] sm:$0xff]
        %v821 = vld [vmem:[%s314 + $0xb8] sm:$0xff]
        %v822 = vld [vmem:[%s314 + $0xc0] sm:$0xff]
        %v823 = vld [vmem:[%s314 + $0xc8] sm:$0xff]
        %v824 = vld [vmem:[%s314 + $0xd0] sm:$0xff]
        %v825 = vld [vmem:[%s314 + $0xd8] sm:$0xff]
        %v826 = vld [vmem:[%s314 + $0xe0] sm:$0xff]
        %v827 = vld [vmem:[%s314 + $0xe8] sm:$0xff]
        %v828 = vld [vmem:[%s314 + $0xf0] sm:$0xff]
        %v829 = vld [vmem:[%s314 + $0xf8] sm:$0xff]
        %v830 = vadd.f32 %v798, %v799
        %v831 = vadd.f32 %v830, %v800
        %v832 = vadd.f32 %v831, %v801
        %v833 = vadd.f32 %v832, %v802
        %v834 = vadd.f32 %v833, %v803
        %v835 = vadd.f32 %v834, %v804
        %v836 = vadd.f32 %v835, %v805
        %v837 = vadd.f32 %v836, %v806
        %v838 = vadd.f32 %v837, %v807
        %v839 = vadd.f32 %v838, %v808
        %v840 = vadd.f32 %v839, %v809
        %v841 = vadd.f32 %v840, %v810
        %v842 = vadd.f32 %v841, %v811
        %v843 = vadd.f32 %v842, %v812
        %v844 = vadd.f32 %v843, %v813
        %v845 = vadd.f32 %v844, %v814
        %v846 = vadd.f32 %v845, %v815
        %v847 = vadd.f32 %v846, %v816
        %v848 = vadd.f32 %v847, %v817
        %v849 = vadd.f32 %v848, %v818
        %v850 = vadd.f32 %v849, %v819
        %v851 = vadd.f32 %v850, %v820
        %v852 = vadd.f32 %v851, %v821
        %v853 = vadd.f32 %v852, %v822
        %v854 = vadd.f32 %v853, %v823
        %v855 = vadd.f32 %v854, %v824
        %v856 = vadd.f32 %v855, %v825
        %v857 = vadd.f32 %v856, %v826
        %v858 = vadd.f32 %v857, %v827
        %v859 = vadd.f32 %v858, %v828
        %v860 = vadd.f32 %v859, %v829
        %v861 = vrot.slane %v860, 4
        %v862 = vadd.f32 %v860, %v861
        %v863 = vrot.slane %v862, 2
        %v864 = vadd.f32 %v862, %v863
        %v865 = vrot.slane %v864, 1
        %v866 = vadd.f32 %v864, %v865
        %v867 = vmul.f32 %v798, %v798
        %v868 = vmul.f32 %v799, %v799
        %v869 = vmul.f32 %v800, %v800
        %v870 = vmul.f32 %v801, %v801
        %v871 = vmul.f32 %v802, %v802
        %v872 = vmul.f32 %v803, %v803
        %v873 = vmul.f32 %v804, %v804
        %v874 = vmul.f32 %v805, %v805
        %v875 = vmul.f32 %v806, %v806
        %v876 = vmul.f32 %v807, %v807
        %v877 = vmul.f32 %v808, %v808
        %v878 = vmul.f32 %v809, %v809
        %v879 = vmul.f32 %v810, %v810
        %v880 = vmul.f32 %v811, %v811
        %v881 = vmul.f32 %v812, %v812
        %v882 = vmul.f32 %v813, %v813
        %v883 = vmul.f32 %v814, %v814
        %v884 = vmul.f32 %v815, %v815
        %v885 = vmul.f32 %v816, %v816
        %v886 = vmul.f32 %v817, %v817
        %v887 = vmul.f32 %v818, %v818
        %v888 = vmul.f32 %v819, %v819
        %v889 = vmul.f32 %v820, %v820
        %v890 = vmul.f32 %v821, %v821
        %v891 = vmul.f32 %v822, %v822
        %v892 = vmul.f32 %v823, %v823
        %v893 = vmul.f32 %v824, %v824
        %v894 = vmul.f32 %v825, %v825
        %v895 = vmul.f32 %v826, %v826
        %v896 = vmul.f32 %v827, %v827
        %v897 = vmul.f32 %v828, %v828
        %v898 = vmul.f32 %v829, %v829
        %v899 = vadd.f32 %v867, %v868
        %v900 = vadd.f32 %v899, %v869
        %v901 = vadd.f32 %v900, %v870
        %v902 = vadd.f32 %v901, %v871
        %v903 = vadd.f32 %v902, %v872
        %v904 = vadd.f32 %v903, %v873
        %v905 = vadd.f32 %v904, %v874
        %v906 = vadd.f32 %v905, %v875
        %v907 = vadd.f32 %v906, %v876
        %v908 = vadd.f32 %v907, %v877
        %v909 = vadd.f32 %v908, %v878
        %v910 = vadd.f32 %v909, %v879
        %v911 = vadd.f32 %v910, %v880
        %v912 = vadd.f32 %v911, %v881
        %v913 = vadd.f32 %v912, %v882
        %v914 = vadd.f32 %v913, %v883
        %v915 = vadd.f32 %v914, %v884
        %v916 = vadd.f32 %v915, %v885
        %v917 = vadd.f32 %v916, %v886
        %v918 = vadd.f32 %v917, %v887
        %v919 = vadd.f32 %v918, %v888
        %v920 = vadd.f32 %v919, %v889
        %v921 = vadd.f32 %v920, %v890
        %v922 = vadd.f32 %v921, %v891
        %v923 = vadd.f32 %v922, %v892
        %v924 = vadd.f32 %v923, %v893
        %v925 = vadd.f32 %v924, %v894
        %v926 = vadd.f32 %v925, %v895
        %v927 = vadd.f32 %v926, %v896
        %v928 = vadd.f32 %v927, %v897
        %v929 = vadd.f32 %v928, %v898
        %v930 = vrot.slane %v929, 4
        %v931 = vadd.f32 %v929, %v930
        %v932 = vrot.slane %v931, 2
        %v933 = vadd.f32 %v931, %v932
        %v934 = vrot.slane %v933, 1
        %v935 = vadd.f32 %v933, %v934
        %936 = vst [vmem:[%s323] sm:$0xff] %v866
        %937 = vst [vmem:[%s331] sm:$0xff] %v935
      $region36: #{upconv2d_block.2} parent=27 // pred_fallthru
        _
      %s938 = smul.u32 32, %s22
      %p939 = scmp.lt.s32.totalorder %s21, 3
      %s940 = scalar_select %p939, %s21, 3
      %p941 = scmp.lt.s32.totalorder %s938, 63
      %s942 = scalar_select %p941, %s938, 63
      %s943 = smul.addr %s940, 64
      %s944 = sadd.s32 %s942, %s943
      %s945 = smul.addr %s944, 8
      %s946 = scalar_lea.vmem %s2, %s945
      %p947 = scmp.lt.s32.totalorder %s21, 3
      %s948 = scalar_select %p947, %s21, 3
      %p949 = scmp.lt.s32.totalorder %s22, 1
      %s950 = scalar_select %p949, %s22, 1
      %s951 = smul.addr %s948, 2
      %s952 = sadd.s32 %s950, %s951
      %s953 = smul.addr %s952, 8
      %s954 = scalar_lea.vmem %s3, %s953
      %p955 = scmp.lt.s32.totalorder %s21, 3
      %s956 = scalar_select %p955, %s21, 3
      %p957 = scmp.lt.s32.totalorder %s22, 1
      %s958 = scalar_select %p957, %s22, 1
      %s959 = smul.addr %s956, 2
      %s960 = sadd.s32 %s958, %s959
      %s961 = smul.addr %s960, 8
      %s962 = scalar_lea.vmem %s4, %s961
      // Predicated region
      $region37: #{upconv2d_block.2} parent=27 // pred_check
        %p963 = pneg %p113
      $region38: #{upconv2d_block.2} parent=27 // pred_check_branch
        %965 = sbr.rel (%p963) target = $region40
      $region39: #{upconv2d_block.2} parent=27 // pred_region
        %s966 = smul.u32 32, %s22
      $region40: #{upconv2d_block.2} parent=27 // pred_fallthru
        _
      // Predicated region
      $region41: #{upconv2d_block.2} parent=27 // pred_check
        %p967 = pneg %p141
      $region42: #{upconv2d_block.2} parent=27 // pred_check_branch
        %969 = sbr.rel (%p967) target = $region44
      $region43: #{upconv2d_block.2} parent=27 // pred_region
        _
      $region44: #{upconv2d_block.2} parent=27 // pred_fallthru
        _
      // Predicated region
      $region45: #{upconv2d_block.2} parent=27 // pred_check
        %p970 = pneg %p169
      $region46: #{upconv2d_block.2} parent=27 // pred_check_branch
        %972 = sbr.rel (%p970) target = $region48
      $region47: #{upconv2d_block.2} parent=27 // pred_region
        _
      $region48: #{upconv2d_block.2} parent=27 // pred_fallthru
        _
    $region28: #{upconv2d_block.2} parent=5 // pred_fallthru
      _
    %p973 = scmp.le.s32.totalorder 2, %s11
    // Predicated region
    $region49: #{upconv2d_block.2} parent=5 // pred_check
      %p974 = pneg %p973
    $region50: #{upconv2d_block.2} parent=5 // pred_check_branch
      %976 = sbr.rel (%p974) target = $region52
    $region51: #{upconv2d_block.2} parent=5 // pred_region
      %s977 = ssub.s32 %s11, 2
      // Predicated region
      $region53: #{upconv2d_block.2} parent=51 // pred_check
        %p978 = pneg %p119
      $region54: #{upconv2d_block.2} parent=51 // pred_check_branch
        %980 = sbr.rel (%p978) target = $region56
      $region55: #{upconv2d_block.2} parent=51 // pred_region
        %s981 = smul.u32 32, %s25
        %p982 = scmp.lt.s32.totalorder %s24, 3
        %s983 = scalar_select %p982, %s24, 3
        %p984 = scmp.lt.s32.totalorder %s981, 63
        %s985 = scalar_select %p984, %s981, 63
        %s986 = smul.addr %s983, 64
        %s987 = sadd.s32 %s985, %s986
        %s988 = smul.addr %s987, 8
        %s989 = scalar_lea.vmem %s2, %s988
      $region56: #{upconv2d_block.2} parent=51 // pred_fallthru
        _
      // Predicated region
      $region57: #{upconv2d_block.2} parent=51 // pred_check
        %p990 = pneg %p147
      $region58: #{upconv2d_block.2} parent=51 // pred_check_branch
        %992 = sbr.rel (%p990) target = $region60
      $region59: #{upconv2d_block.2} parent=51 // pred_region
        %p993 = scmp.lt.s32.totalorder %s24, 3
        %s994 = scalar_select %p993, %s24, 3
        %p995 = scmp.lt.s32.totalorder %s25, 1
        %s996 = scalar_select %p995, %s25, 1
        %s997 = smul.addr %s994, 2
        %s998 = sadd.s32 %s996, %s997
        %s999 = smul.addr %s998, 8
        %s1000 = scalar_lea.vmem %s3, %s999
      $region60: #{upconv2d_block.2} parent=51 // pred_fallthru
        _
      // Predicated region
      $region61: #{upconv2d_block.2} parent=51 // pred_check
        %p1001 = pneg %p175
      $region62: #{upconv2d_block.2} parent=51 // pred_check_branch
        %1003 = sbr.rel (%p1001) target = $region64
      $region63: #{upconv2d_block.2} parent=51 // pred_region
        %p1004 = scmp.lt.s32.totalorder %s24, 3
        %s1005 = scalar_select %p1004, %s24, 3
        %p1006 = scmp.lt.s32.totalorder %s25, 1
        %s1007 = scalar_select %p1006, %s25, 1
        %s1008 = smul.addr %s1005, 2
        %s1009 = sadd.s32 %s1007, %s1008
        %s1010 = smul.addr %s1009, 8
        %s1011 = scalar_lea.vmem %s4, %s1010
      $region64: #{upconv2d_block.2} parent=51 // pred_fallthru
        _
    $region52: #{upconv2d_block.2} parent=5 // pred_fallthru
      _
  $region6: #{upconv2d_block.2} parent=0 // loop_footer
    %s15 = sadd.s32 1, %s11
  $region7: #{upconv2d_block.2} parent=0 // loop_footer_branch
    %10 = sbr.rel target = $region3
  $region8: #{upconv2d_block.2} parent=0 // loop_exit
    _

</llo_original>
